<compile_context>
chip_gen: v7x
topology: tpu7x:2x2x1
jax: 0.10.0
libtpu: 0.0.40
codegen_flags: <defaults>
</compile_context>

<pallas_src>
import functools

import jax
import jax.numpy as jnp
from jax.experimental import pallas as pl
from jax.experimental.pallas import tpu as pltpu


# ---------- fused kernel: hg 1x1 -> 3x3 im2col -> fused heads -> sigmoid + NMS ------------


def _flat_shift(a, d, hw):
    """out[:, p] = a[:, p + d] for 0 <= p + d < hw, else 0 (a has hw lanes)."""
    if d == 0:
        return a
    z = jnp.zeros((a.shape[0], abs(d)), a.dtype)
    if d > 0:
        return jnp.concatenate([a[:, d:], z], axis=1)
    return jnp.concatenate([z, a[:, :hw + d]], axis=1)


def _fused_kernel(img_ref, whg_ref, bhg_ref, wmod_ref, bmod_ref, whead_ref, bhead_ref,
                  out_ref, heat_ref, *, H, W, cat, radius):
    """Processes B images per grid step; everything channels-major (C, H*W), lane-dense.

    img_ref  : (B, Cin, HW)  image block — the free reshape of NCHW, no host transpose
    whg_ref  : (F, Cin)      hg 1x1 conv weight (native OI layout)
    bhg_ref  : (F, 1)
    wmod_ref : (F, 9*F)      3x3 conv weight, columns ordered (ky,kx)-major then Cin
    bmod_ref : (F, 1)
    whead_ref: (Co, F)       fused [props|offsets|wh] 1x1 heads
    bhead_ref: (Co, 1)
    out_ref  : (B, Co, HW)   fused head logits, already NCHW ordered, lane-dense store
    heat_ref : (B, cat, HW)  sigmoid + NMS of the props rows (fused; no second kernel)
    """
    HW = H * W
    B = img_ref.shape[0]

    # x coordinate of every flattened pixel (shared by all taps / images; traced once).
    x_pos = jax.lax.broadcasted_iota(jnp.int32, (1, HW), 1) % W

    def x_valid(dx):
        # Only the horizontal neighbour x+dx needs a mask; vertical out-of-range neighbours
        # land outside [0, HW) in the flat index and are zero-filled by _flat_shift.
        if dx == 0:
            return None
        valid = x_pos < (W - dx) if dx > 0 else x_pos >= (-dx)
        return valid.astype(jnp.float32)

    conv_masks = {dx: x_valid(dx) for dx in (-1, 0, 1)}
    nms_masks = {dx: x_valid(dx) for dx in range(-radius, radius + 1)} if radius else {}

    whg, bhg = whg_ref[...], bhg_ref[...]
    wmod, bmod = wmod_ref[...], bmod_ref[...]
    whead, bhead = whead_ref[...], bhead_ref[...]

    for b in range(B):  # static unroll: amortizes the fixed per-grid-step cost
        # --- hg backbone: 1x1 conv + ReLU, operands in their stored orientation ---
        cnv = jnp.dot(whg, img_ref[b], preferred_element_type=jnp.float32)
        cnv = jnp.maximum(cnv + bhg, 0.0)                                   # (F, HW)

        # --- tl_module: 3x3 'same' conv as ONE K=9F matmul over an in-VMEM im2col ---
        taps = []
        for t in range(9):
            dy, dx = divmod(t, 3)
            dy, dx = dy - 1, dx - 1
            s = _flat_shift(cnv, dy * W + dx, HW)
            if conv_masks[dx] is not None:
                s = s * conv_masks[dx]
            taps.append(s)
        im2col = jnp.concatenate(taps, axis=0)                              # (9F, HW)
        mod = jnp.dot(wmod, im2col, preferred_element_type=jnp.float32)
        mod = jnp.maximum(mod + bmod, 0.0)                                  # (F, HW)

        # --- fused 1x1 heads: (Co, F) @ (F, HW), lane-dense, already NCHW ---
        out = jnp.dot(whead, mod, preferred_element_type=jnp.float32) + bhead
        out_ref[b] = out                                                    # (Co, HW)

        # --- fused sigmoid + separable NMS max-pool on the resident props rows ---
        p = jax.nn.sigmoid(out[:cat])                                       # (cat, HW)
        if radius == 0:
            heat_ref[b] = p
        else:
            # Zero fill never wins the max because sigmoid > 0 (same result as -inf pad).
            rowmax = p
            for dy in range(-radius, radius + 1):
                if dy:
                    rowmax = jnp.maximum(rowmax, _flat_shift(p, dy * W, HW))
            hmax = rowmax
            for dx in range(-radius, radius + 1):
                if dx:
                    hmax = jnp.maximum(hmax, _flat_shift(rowmax, dx, HW) * nms_masks[dx])
            keep = (hmax == p).astype(p.dtype)
            heat_ref[b] = p * keep


def _pick_images_per_step(n, max_per_step=8):
    """Batch images per grid step to amortize the ~0.35us step cost on single-TC v5e/v6e,
    while keeping the grid length >= 2 so v7x's two TensorCores stay balanced."""
    if n < 2:
        return 1
    b = min(n // 2, max_per_step)
    while n % b:
        b -= 1
    return max(b, 1)


def conv_stack_nms(img_f, whg, bhg, wmod, bmod, whead, bhead, *, H, W, cat,
                   nms_kernel=1, images_per_step=None):
    """img_f: (N, Cin, H*W) f32 (free reshape of NCHW).

    Returns:
      heads: (N, Co, H*W)  fused [props|offsets|wh] logits in NCHW channel order
      heat : (N, cat, H*W) sigmoid(props) * (maxpool(sigmoid(props), nms_kernel) == .)
    """
    assert nms_kernel % 2 == 1, "only odd NMS kernels supported"
    radius = (nms_kernel - 1) // 2
    N, Cin, HW = img_f.shape
    feat = whg.shape[0]
    Co = whead.shape[0]
    B = _pick_images_per_step(N) if images_per_step is None else images_per_step
    assert N % B == 0

    # TODO(synk): for large H*W, tile the spatial dim (1-pixel halo) instead of whole images
    # per step and set pltpu.CompilerParams(vmem_limit_bytes=...) against v7x's 64 MiB VMEM.
    kernel_fn = functools.partial(_fused_kernel, H=H, W=W, cat=cat, radius=radius)
    return pl.pallas_call(
        kernel_fn,
        out_shape=(jax.ShapeDtypeStruct((N, Co, HW), jnp.float32),
                   jax.ShapeDtypeStruct((N, cat, HW), jnp.float32)),
        grid=(N // B,),
        in_specs=[
            pl.BlockSpec((B, Cin, HW), lambda n: (n, 0, 0)),
            pl.BlockSpec((feat, Cin), lambda n: (0, 0)),
            pl.BlockSpec((feat, 1), lambda n: (0, 0)),
            pl.BlockSpec((feat, 9 * feat), lambda n: (0, 0)),
            pl.BlockSpec((feat, 1), lambda n: (0, 0)),
            pl.BlockSpec((Co, feat), lambda n: (0, 0)),
            pl.BlockSpec((Co, 1), lambda n: (0, 0)),
        ],
        out_specs=(
            pl.BlockSpec((B, Co, HW), lambda n: (n, 0, 0)),
            pl.BlockSpec((B, cat, HW), lambda n: (n, 0, 0)),
        ),
        compiler_params=pltpu.CompilerParams(dimension_semantics=("parallel",)),
    )(img_f, whg, bhg, wmod, bmod, whead, bhead)


# ------------------------------------ _decode ---------------------------------------------


def decode(heat, tl_offsets, tl_edges, K=100, score_threshold=1, num_dets=1000):
    """heat: (N, cat, H*W) already sigmoid+NMS'd by the fused kernel.
    tl_offsets / tl_edges: (N, cat, 2, H, W) in their native NCHW-derived layout."""
    batch, _, _, height, width = tl_offsets.shape
    hw = height * width
    # TODO(synk): reference calls `.topk(-1, K)` (invalid in PyTorch); implementing the
    # intended top-K over the flattened (C*H*W) axis. score_threshold / num_dets are unused
    # in the reference path and kept only for signature parity.
    topk_scores, topk_inds = jax.lax.top_k(heat.reshape(batch, -1), K)
    topk_clses = (topk_inds // hw).astype(jnp.int32)
    pos = topk_inds % hw
    topk_ys = (pos // width).astype(jnp.float32)
    topk_xs = (pos % width).astype(jnp.float32)

    # Gather straight from the native (N, C, 2, H, W) flat layout: idx = c*2*HW + k*HW + pos
    # (no host-side permutes of the offset / edge maps).
    base = topk_clses * (2 * hw) + pos
    offs_flat = tl_offsets.reshape(batch, -1)
    edges_flat = tl_edges.reshape(batch, -1)
    off_x = jnp.take_along_axis(offs_flat, base, axis=1)
    off_y = jnp.take_along_axis(offs_flat, base + hw, axis=1)
    edge_x = jnp.take_along_axis(edges_flat, base, axis=1)
    edge_y = jnp.take_along_axis(edges_flat, base + hw, axis=1)

    x0 = topk_xs + off_x
    y0 = topk_ys + off_y
    # TODO(synk): reference uses the full `tl_edges` map here (shape-mismatched broadcast bug);
    # using the gathered `topk_edges` while keeping the reference's `y1 = x1 + edge_y` form.
    x1 = x0 + edge_x
    y1 = x1 + edge_y
    # TODO(synk): torch.stack over mixed int/float dtypes would error; classes cast to float32.
    return jnp.stack([x0, y0, x1, y1, topk_scores, topk_clses.astype(jnp.float32)])


# ---------------------------- hg_net_edge (test path) --------------------------------------


def init_params(key, in_ch=3, feat=32, cat=2):
    ks = jax.random.split(key, 10)

    def w(k, shape, scale=0.1):
        return jax.random.normal(k, shape, jnp.float32) * scale

    return {
        # synthetic hourglass backbone: 1x1 conv in_ch -> feat, ReLU
        "hg_w": w(ks[0], (feat, in_ch, 1, 1)), "hg_b": w(ks[1], (feat,)),
        # tl_module: 3x3 conv feat -> feat, ReLU
        "mod_w": w(ks[2], (feat, feat, 3, 3)), "mod_b": w(ks[3], (feat,)),
        # heads (1x1 convs)
        "props_w": w(ks[4], (cat, feat, 1, 1)), "props_b": w(ks[5], (cat,)),
        "off_w": w(ks[6], (2 * cat, feat, 1, 1)), "off_b": w(ks[7], (2 * cat,)),
        "wh_w": w(ks[8], (2 * cat, feat, 1, 1)), "wh_b": w(ks[9], (2 * cat,)),
    }


def _prepare_weights(params):
    feat, in_ch = params["hg_w"].shape[:2]
    cat = params["props_w"].shape[0]
    whg = params["hg_w"].reshape(feat, in_ch)                                    # (F, Cin)
    bhg = params["hg_b"].reshape(feat, 1)
    # (Cout, Cin, 3, 3) -> (Cout, ky, kx, Cin) -> (F, 9F): column = (ky*3+kx)*F + cin,
    # matching the tap-major im2col rows built inside the kernel.
    wmod = jnp.transpose(params["mod_w"], (0, 2, 3, 1)).reshape(feat, 9 * feat)
    bmod = params["mod_b"].reshape(feat, 1)
    whead = jnp.concatenate([params["props_w"].reshape(cat, feat),
                             params["off_w"].reshape(2 * cat, feat),
                             params["wh_w"].reshape(2 * cat, feat)], axis=0)     # (Co, F)
    bhead = jnp.concatenate([params["props_b"], params["off_b"],
                             params["wh_b"]]).reshape(-1, 1)                     # (Co, 1)
    return whg, bhg, wmod, bmod, whead, bhead


def hg_net_edge_forward_test(params, image, *, K=100, kernel=1, images_per_step=None):
    """Equivalent of hg_net_edge.forward(image, test=True, K=K, kernel=kernel)."""
    N, Cin, H, W = image.shape
    cat = params["props_w"].shape[0]

    img_f = image.reshape(N, Cin, H * W)        # free reshape of NCHW — no host transpose
    weights = _prepare_weights(params)
    heads, heat = conv_stack_nms(img_f, *weights, H=H, W=W, cat=cat,
                                 nms_kernel=kernel, images_per_step=images_per_step)

    # Split the fused head output (already NCHW channel-major) — matches the PyTorch
    # per-head conv outputs and the reference's .reshape(N, C, -1, H, W).
    tl_props = heads[:, :cat, :].reshape(N, cat, H, W)
    tl_offsets = heads[:, cat:3 * cat, :].reshape(N, cat, 2, H, W)
    tl_wh = heads[:, 3 * cat:, :].reshape(N, cat, 2, H, W)

    bboxes = decode(heat, tl_offsets, tl_wh, K=K)
    return bboxes, tl_props, tl_offsets, tl_wh


# ------------------------- pure-JAX reference (verification only) --------------------------


def _reference_forward(params, image, *, nms_kernel):
    N, _, H, W = image.shape
    cat = params["props_w"].shape[0]

    def conv(x, w, b, pad):
        y = jax.lax.conv_general_dilated(
            x, w, (1, 1), [(pad, pad), (pad, pad)],
            dimension_numbers=("NCHW", "OIHW", "NCHW"),
            precision=jax.lax.Precision.HIGHEST)
        return y + b.reshape(1, -1, 1, 1)

    cnv = jax.nn.relu(conv(image, params["hg_w"], params["hg_b"], 0))
    mod = jax.nn.relu(conv(cnv, params["mod_w"], params["mod_b"], 1))
    tl_props = conv(mod, params["props_w"], params["props_b"], 0)
    tl_off = conv(mod, params["off_w"], params["off_b"], 0).reshape(N, cat, 2, H, W)
    tl_wh = conv(mod, params["wh_w"], params["wh_b"], 0).reshape(N, cat, 2, H, W)

    p = jax.nn.sigmoid(tl_props)
    r = (nms_kernel - 1) // 2
    hmax = jax.lax.reduce_window(p, -jnp.inf, jax.lax.max,
                                 (1, 1, nms_kernel, nms_kernel), (1, 1, 1, 1),
                                 [(0, 0), (0, 0), (r, r), (r, r)])
    heat = p * (hmax == p).astype(p.dtype)
    return tl_props, tl_off, tl_wh, heat


if __name__ == "__main__":
    key = jax.random.PRNGKey(0)
    kp, ki = jax.random.split(key)
    cat, feat = 2, 32
    params = init_params(kp, in_ch=3, feat=feat, cat=cat)
    image = jax.random.normal(ki, (2, 3, 16, 16), jnp.float32)   # NCHW, like PyTorch

    fwd = jax.jit(functools.partial(hg_net_edge_forward_test, K=16, kernel=3))
    bboxes, tl_props, tl_offsets, tl_wh = jax.block_until_ready(fwd(params, image))

    assert bboxes.shape == (6, 2, 16)
    assert tl_props.shape == (2, 2, 16, 16)
    assert tl_offsets.shape == (2, 2, 2, 16, 16)
    assert tl_wh.shape == (2, 2, 2, 16, 16)

    # Numerical check of the fused Pallas kernel against the pure-JAX reference.
    heads, heat = jax.block_until_ready(
        jax.jit(functools.partial(conv_stack_nms, H=16, W=16, cat=cat, nms_kernel=3))(
            image.reshape(2, 3, 256), *_prepare_weights(params)))
    ref_props, ref_off, ref_wh, ref_heat = jax.block_until_ready(
        jax.jit(functools.partial(_reference_forward, nms_kernel=3))(params, image))
    tol = dict(atol=2e-3, rtol=2e-3)
    assert jnp.allclose(heads[:, :cat, :].reshape(ref_props.shape), ref_props, **tol)
    assert jnp.allclose(heads[:, cat:3 * cat, :].reshape(ref_off.shape), ref_off, **tol)
    assert jnp.allclose(heads[:, 3 * cat:, :].reshape(ref_wh.shape), ref_wh, **tol)
    assert jnp.allclose(heat.reshape(ref_heat.shape), ref_heat, **tol)

    print("KERNEL_OK")
</pallas_src>

<mosaic_0001>
module attributes {stable_mosaic.version = 11 : i64} {
  func.func @_fused_kernel(%arg0: i32, %arg1: memref<1x3x256xf32, #tpu.memory_space<vmem>>, %arg2: memref<32x3xf32, #tpu.memory_space<vmem>>, %arg3: memref<32x1xf32, #tpu.memory_space<vmem>>, %arg4: memref<32x288xf32, #tpu.memory_space<vmem>>, %arg5: memref<32x1xf32, #tpu.memory_space<vmem>>, %arg6: memref<10x32xf32, #tpu.memory_space<vmem>>, %arg7: memref<10x1xf32, #tpu.memory_space<vmem>>, %arg8: memref<1x10x256xf32, #tpu.memory_space<vmem>>, %arg9: memref<1x2x256xf32, #tpu.memory_space<vmem>>) attributes {dimension_semantics = [#tpu.dimension_semantics<parallel>], iteration_bounds = array<i64: 2>, scalar_prefetch = 0 : i64, scratch_operands = 0 : i64, tpu.core_type = #tpu.core_type<tc>, window_params = [{transform_indices = @transform_0, window_bounds = array<i64: 1, 3, 256>}, {pipeline_mode = #tpu.pipeline_mode<synchronous>, transform_indices = @transform_1, window_bounds = array<i64: 32, 3>}, {pipeline_mode = #tpu.pipeline_mode<synchronous>, transform_indices = @transform_2, window_bounds = array<i64: 32, 1>}, {pipeline_mode = #tpu.pipeline_mode<synchronous>, transform_indices = @transform_3, window_bounds = array<i64: 32, 288>}, {pipeline_mode = #tpu.pipeline_mode<synchronous>, transform_indices = @transform_4, window_bounds = array<i64: 32, 1>}, {pipeline_mode = #tpu.pipeline_mode<synchronous>, transform_indices = @transform_5, window_bounds = array<i64: 10, 32>}, {pipeline_mode = #tpu.pipeline_mode<synchronous>, transform_indices = @transform_6, window_bounds = array<i64: 10, 1>}, {transform_indices = @transform_7, window_bounds = array<i64: 1, 10, 256>}, {transform_indices = @transform_8, window_bounds = array<i64: 1, 2, 256>}]} {
    %0 = tpu.iota {dimensions = array<i32: 1>} : vector<1x256xi32>
    %c16_i32 = arith.constant 16 : i32
    %c0_i32 = arith.constant 0 : i32
    %1 = arith.cmpi eq, %c16_i32, %c0_i32 : i32
    %c1_i32 = arith.constant 1 : i32
    %2 = arith.select %1, %c1_i32, %c16_i32 : i32
    %3 = vector.broadcast %2 : i32 to vector<1x256xi32>
    %4 = arith.remsi %0, %3 : vector<1x256xi32>
    %c0_i32_0 = arith.constant 0 : i32
    %5 = vector.broadcast %c0_i32_0 : i32 to vector<1x256xi32>
    %6 = arith.cmpi ne, %4, %5 : vector<1x256xi32>
    %c0_i32_1 = arith.constant 0 : i32
    %7 = vector.broadcast %c0_i32_1 : i32 to vector<1x256xi32>
    %8 = arith.cmpi slt, %4, %7 : vector<1x256xi32>
    %c0_i32_2 = arith.constant 0 : i32
    %9 = arith.cmpi slt, %2, %c0_i32_2 : i32
    %10 = vector.broadcast %9 : i1 to vector<1x256xi1>
    %11 = vector.broadcast %10 : vector<1x256xi1> to vector<1x256xi1>
    %12 = arith.xori %8, %11 : vector<1x256xi1>
    %13 = arith.andi %12, %6 : vector<1x256xi1>
    %14 = vector.broadcast %2 : i32 to vector<1x256xi32>
    %15 = arith.addi %4, %14 : vector<1x256xi32>
    %16 = arith.select %13, %15, %4 : vector<1x256xi1>, vector<1x256xi32>
    %c1_i32_3 = arith.constant 1 : i32
    %17 = vector.broadcast %c1_i32_3 : i32 to vector<1x256xi32>
    %18 = arith.cmpi sge, %16, %17 : vector<1x256xi32>
    %19 = arith.extui %18 : vector<1x256xi1> to vector<1x256xi32>
    %20 = arith.sitofp %19 : vector<1x256xi32> to vector<1x256xf32>
    %c15_i32 = arith.constant 15 : i32
    %21 = vector.broadcast %c15_i32 : i32 to vector<1x256xi32>
    %22 = arith.cmpi slt, %16, %21 : vector<1x256xi32>
    %23 = arith.extui %22 : vector<1x256xi1> to vector<1x256xi32>
    %24 = arith.sitofp %23 : vector<1x256xi32> to vector<1x256xf32>
    %c1_i32_4 = arith.constant 1 : i32
    %25 = vector.broadcast %c1_i32_4 : i32 to vector<1x256xi32>
    %26 = arith.cmpi sge, %16, %25 : vector<1x256xi32>
    %27 = arith.extui %26 : vector<1x256xi1> to vector<1x256xi32>
    %28 = arith.sitofp %27 : vector<1x256xi32> to vector<1x256xf32>
    %c15_i32_5 = arith.constant 15 : i32
    %29 = vector.broadcast %c15_i32_5 : i32 to vector<1x256xi32>
    %30 = arith.cmpi slt, %16, %29 : vector<1x256xi32>
    %31 = arith.extui %30 : vector<1x256xi1> to vector<1x256xi32>
    %32 = arith.sitofp %31 : vector<1x256xi32> to vector<1x256xf32>
    %c0 = arith.constant 0 : index
    %c0_6 = arith.constant 0 : index
    %33 = vector.load %arg2[%c0, %c0_6] : memref<32x3xf32, #tpu.memory_space<vmem>>, vector<32x3xf32>
    %c0_7 = arith.constant 0 : index
    %c0_8 = arith.constant 0 : index
    %34 = vector.load %arg3[%c0_7, %c0_8] : memref<32x1xf32, #tpu.memory_space<vmem>>, vector<32x1xf32>
    %c0_9 = arith.constant 0 : index
    %c0_10 = arith.constant 0 : index
    %35 = vector.load %arg4[%c0_9, %c0_10] : memref<32x288xf32, #tpu.memory_space<vmem>>, vector<32x288xf32>
    %c0_11 = arith.constant 0 : index
    %c0_12 = arith.constant 0 : index
    %36 = vector.load %arg5[%c0_11, %c0_12] : memref<32x1xf32, #tpu.memory_space<vmem>>, vector<32x1xf32>
    %c0_13 = arith.constant 0 : index
    %c0_14 = arith.constant 0 : index
    %37 = vector.load %arg6[%c0_13, %c0_14] : memref<10x32xf32, #tpu.memory_space<vmem>>, vector<10x32xf32>
    %c0_15 = arith.constant 0 : index
    %c0_16 = arith.constant 0 : index
    %38 = vector.load %arg7[%c0_15, %c0_16] : memref<10x1xf32, #tpu.memory_space<vmem>>, vector<10x1xf32>
    %c0_17 = arith.constant 0 : index
    %c0_18 = arith.constant 0 : index
    %c0_19 = arith.constant 0 : index
    %39 = vector.load %arg1[%c0_17, %c0_18, %c0_19] : memref<1x3x256xf32, #tpu.memory_space<vmem>>, vector<1x3x256xf32>
    %40 = vector.shape_cast %39 : vector<1x3x256xf32> to vector<3x256xf32>
    %cst = arith.constant dense<0.000000e+00> : vector<32x256xf32>
    %41 = tpu.matmul %33, %40, %cst {dimension_numbers = #tpu.dot_dimension_numbers<[1], [0], [0], [1], [0, 0, 1, 1], [], []>} : vector<32x3xf32>, vector<3x256xf32>, vector<32x256xf32> -> vector<32x256xf32>
    %42 = vector.broadcast %34 : vector<32x1xf32> to vector<32x256xf32>
    %43 = arith.addf %41, %42 : vector<32x256xf32>
    %cst_20 = arith.constant 0.000000e+00 : f32
    %44 = vector.broadcast %cst_20 : f32 to vector<32x256xf32>
    %45 = arith.maximumf %43, %44 : vector<32x256xf32>
    %cst_21 = arith.constant 0.000000e+00 : f32
    %46 = vector.broadcast %cst_21 : f32 to vector<32x17xf32>
    %47 = vector.extract_strided_slice %45 {offsets = [0, 0], sizes = [32, 239], strides = [1, 1]} : vector<32x256xf32> to vector<32x239xf32>
    %48 = tpu.concatenate %46, %47 in 1 : vector<32x17xf32>, vector<32x239xf32> -> vector<32x256xf32>
    %49 = vector.broadcast %20 : vector<1x256xf32> to vector<32x256xf32>
    %50 = arith.mulf %48, %49 : vector<32x256xf32>
    %cst_22 = arith.constant 0.000000e+00 : f32
    %51 = vector.broadcast %cst_22 : f32 to vector<32x16xf32>
    %52 = vector.extract_strided_slice %45 {offsets = [0, 0], sizes = [32, 240], strides = [1, 1]} : vector<32x256xf32> to vector<32x240xf32>
    %53 = tpu.concatenate %51, %52 in 1 : vector<32x16xf32>, vector<32x240xf32> -> vector<32x256xf32>
    %cst_23 = arith.constant 0.000000e+00 : f32
    %54 = vector.broadcast %cst_23 : f32 to vector<32x15xf32>
    %55 = vector.extract_strided_slice %45 {offsets = [0, 0], sizes = [32, 241], strides = [1, 1]} : vector<32x256xf32> to vector<32x241xf32>
    %56 = tpu.concatenate %54, %55 in 1 : vector<32x15xf32>, vector<32x241xf32> -> vector<32x256xf32>
    %57 = vector.broadcast %24 : vector<1x256xf32> to vector<32x256xf32>
    %58 = arith.mulf %56, %57 : vector<32x256xf32>
    %cst_24 = arith.constant 0.000000e+00 : f32
    %59 = vector.broadcast %cst_24 : f32 to vector<32x1xf32>
    %60 = vector.extract_strided_slice %45 {offsets = [0, 0], sizes = [32, 255], strides = [1, 1]} : vector<32x256xf32> to vector<32x255xf32>
    %61 = tpu.concatenate %59, %60 in 1 : vector<32x1xf32>, vector<32x255xf32> -> vector<32x256xf32>
    %62 = vector.broadcast %20 : vector<1x256xf32> to vector<32x256xf32>
    %63 = arith.mulf %61, %62 : vector<32x256xf32>
    %cst_25 = arith.constant 0.000000e+00 : f32
    %64 = vector.broadcast %cst_25 : f32 to vector<32x1xf32>
    %65 = vector.extract_strided_slice %45 {offsets = [0, 1], sizes = [32, 255], strides = [1, 1]} : vector<32x256xf32> to vector<32x255xf32>
    %66 = tpu.concatenate %65, %64 in 1 : vector<32x255xf32>, vector<32x1xf32> -> vector<32x256xf32>
    %67 = vector.broadcast %24 : vector<1x256xf32> to vector<32x256xf32>
    %68 = arith.mulf %66, %67 : vector<32x256xf32>
    %cst_26 = arith.constant 0.000000e+00 : f32
    %69 = vector.broadcast %cst_26 : f32 to vector<32x15xf32>
    %70 = vector.extract_strided_slice %45 {offsets = [0, 15], sizes = [32, 241], strides = [1, 1]} : vector<32x256xf32> to vector<32x241xf32>
    %71 = tpu.concatenate %70, %69 in 1 : vector<32x241xf32>, vector<32x15xf32> -> vector<32x256xf32>
    %72 = vector.broadcast %20 : vector<1x256xf32> to vector<32x256xf32>
    %73 = arith.mulf %71, %72 : vector<32x256xf32>
    %cst_27 = arith.constant 0.000000e+00 : f32
    %74 = vector.broadcast %cst_27 : f32 to vector<32x16xf32>
    %75 = vector.extract_strided_slice %45 {offsets = [0, 16], sizes = [32, 240], strides = [1, 1]} : vector<32x256xf32> to vector<32x240xf32>
    %76 = tpu.concatenate %75, %74 in 1 : vector<32x240xf32>, vector<32x16xf32> -> vector<32x256xf32>
    %cst_28 = arith.constant 0.000000e+00 : f32
    %77 = vector.broadcast %cst_28 : f32 to vector<32x17xf32>
    %78 = vector.extract_strided_slice %45 {offsets = [0, 17], sizes = [32, 239], strides = [1, 1]} : vector<32x256xf32> to vector<32x239xf32>
    %79 = tpu.concatenate %78, %77 in 1 : vector<32x239xf32>, vector<32x17xf32> -> vector<32x256xf32>
    %80 = vector.broadcast %24 : vector<1x256xf32> to vector<32x256xf32>
    %81 = arith.mulf %79, %80 : vector<32x256xf32>
    %82 = tpu.concatenate %50, %53, %58, %63, %45, %68, %73, %76, %81 in 0 : vector<32x256xf32>, vector<32x256xf32>, vector<32x256xf32>, vector<32x256xf32>, vector<32x256xf32>, vector<32x256xf32>, vector<32x256xf32>, vector<32x256xf32>, vector<32x256xf32> -> vector<288x256xf32>
    %cst_29 = arith.constant dense<0.000000e+00> : vector<32x256xf32>
    %83 = tpu.matmul %35, %82, %cst_29 {dimension_numbers = #tpu.dot_dimension_numbers<[1], [0], [0], [1], [0, 0, 1, 1], [], []>} : vector<32x288xf32>, vector<288x256xf32>, vector<32x256xf32> -> vector<32x256xf32>
    %84 = vector.broadcast %36 : vector<32x1xf32> to vector<32x256xf32>
    %85 = arith.addf %83, %84 : vector<32x256xf32>
    %cst_30 = arith.constant 0.000000e+00 : f32
    %86 = vector.broadcast %cst_30 : f32 to vector<32x256xf32>
    %87 = arith.maximumf %85, %86 : vector<32x256xf32>
    %cst_31 = arith.constant dense<0.000000e+00> : vector<10x256xf32>
    %88 = tpu.matmul %37, %87, %cst_31 {dimension_numbers = #tpu.dot_dimension_numbers<[1], [0], [0], [1], [0, 0, 1, 1], [], []>} : vector<10x32xf32>, vector<32x256xf32>, vector<10x256xf32> -> vector<10x256xf32>
    %89 = vector.broadcast %38 : vector<10x1xf32> to vector<10x256xf32>
    %90 = arith.addf %88, %89 : vector<10x256xf32>
    %c0_32 = arith.constant 0 : index
    %c0_33 = arith.constant 0 : index
    %c0_34 = arith.constant 0 : index
    %91 = vector.load %arg8[%c0_32, %c0_33, %c0_34] : memref<1x10x256xf32, #tpu.memory_space<vmem>>, vector<1x10x256xf32>
    %92 = vector.shape_cast %91 : vector<1x10x256xf32> to vector<10x256xf32>
    %93 = vector.shape_cast %90 : vector<10x256xf32> to vector<1x10x256xf32>
    tpu.vector_store %arg8[%c0_32, %c0_33, %c0_34], %93 {strides = array<i32>} : memref<1x10x256xf32, #tpu.memory_space<vmem>>, vector<1x10x256xf32>,
    %94 = vector.extract_strided_slice %90 {offsets = [0, 0], sizes = [2, 256], strides = [1, 1]} : vector<10x256xf32> to vector<2x256xf32>
    %95 = arith.negf %94 : vector<2x256xf32>
    %96 = math.exp %95 : vector<2x256xf32>
    %cst_35 = arith.constant 1.000000e+00 : f32
    %97 = vector.broadcast %cst_35 : f32 to vector<2x256xf32>
    %98 = arith.addf %97, %96 : vector<2x256xf32>
    %99 = arith.divf %97, %98 : vector<2x256xf32>
    %cst_36 = arith.constant 0.000000e+00 : f32
    %100 = vector.broadcast %cst_36 : f32 to vector<2x16xf32>
    %101 = vector.extract_strided_slice %99 {offsets = [0, 0], sizes = [2, 240], strides = [1, 1]} : vector<2x256xf32> to vector<2x240xf32>
    %102 = tpu.concatenate %100, %101 in 1 : vector<2x16xf32>, vector<2x240xf32> -> vector<2x256xf32>
    %103 = arith.maximumf %99, %102 : vector<2x256xf32>
    %cst_37 = arith.constant 0.000000e+00 : f32
    %104 = vector.broadcast %cst_37 : f32 to vector<2x16xf32>
    %105 = vector.extract_strided_slice %99 {offsets = [0, 16], sizes = [2, 240], strides = [1, 1]} : vector<2x256xf32> to vector<2x240xf32>
    %106 = tpu.concatenate %105, %104 in 1 : vector<2x240xf32>, vector<2x16xf32> -> vector<2x256xf32>
    %107 = arith.maximumf %103, %106 : vector<2x256xf32>
    %cst_38 = arith.constant 0.000000e+00 : f32
    %108 = vector.broadcast %cst_38 : f32 to vector<2x1xf32>
    %109 = vector.extract_strided_slice %107 {offsets = [0, 0], sizes = [2, 255], strides = [1, 1]} : vector<2x256xf32> to vector<2x255xf32>
    %110 = tpu.concatenate %108, %109 in 1 : vector<2x1xf32>, vector<2x255xf32> -> vector<2x256xf32>
    %111 = vector.broadcast %28 : vector<1x256xf32> to vector<2x256xf32>
    %112 = arith.mulf %110, %111 : vector<2x256xf32>
    %113 = arith.maximumf %107, %112 : vector<2x256xf32>
    %cst_39 = arith.constant 0.000000e+00 : f32
    %114 = vector.broadcast %cst_39 : f32 to vector<2x1xf32>
    %115 = vector.extract_strided_slice %107 {offsets = [0, 1], sizes = [2, 255], strides = [1, 1]} : vector<2x256xf32> to vector<2x255xf32>
    %116 = tpu.concatenate %115, %114 in 1 : vector<2x255xf32>, vector<2x1xf32> -> vector<2x256xf32>
    %117 = vector.broadcast %32 : vector<1x256xf32> to vector<2x256xf32>
    %118 = arith.mulf %116, %117 : vector<2x256xf32>
    %119 = arith.maximumf %113, %118 : vector<2x256xf32>
    %120 = arith.cmpf oeq, %119, %99 : vector<2x256xf32>
    %121 = arith.extui %120 : vector<2x256xi1> to vector<2x256xi32>
    %122 = arith.sitofp %121 : vector<2x256xi32> to vector<2x256xf32>
    %123 = arith.mulf %99, %122 : vector<2x256xf32>
    %c0_40 = arith.constant 0 : index
    %c0_41 = arith.constant 0 : index
    %c0_42 = arith.constant 0 : index
    %124 = vector.load %arg9[%c0_40, %c0_41, %c0_42] : memref<1x2x256xf32, #tpu.memory_space<vmem>>, vector<1x2x256xf32>
    %125 = vector.shape_cast %124 : vector<1x2x256xf32> to vector<2x256xf32>
    %126 = vector.shape_cast %123 : vector<2x256xf32> to vector<1x2x256xf32>
    tpu.vector_store %arg9[%c0_40, %c0_41, %c0_42], %126 {strides = array<i32>} : memref<1x2x256xf32, #tpu.memory_space<vmem>>, vector<1x2x256xf32>,
    return
  }
  func.func @transform_0(%arg0: i32) -> (i32, i32, i32) {
    %c0_i32 = arith.constant 0 : i32
    %c0_i32_0 = arith.constant 0 : i32
    %c0_i32_1 = arith.constant 0 : i32
    return %arg0, %c0_i32, %c0_i32_0 : i32, i32, i32
  }
  func.func @transform_1(%arg0: i32) -> (i32, i32) {
    %c0_i32 = arith.constant 0 : i32
    %c0_i32_0 = arith.constant 0 : i32
    %c0_i32_1 = arith.constant 0 : i32
    return %c0_i32, %c0_i32_0 : i32, i32
  }
  func.func @transform_2(%arg0: i32) -> (i32, i32) {
    %c0_i32 = arith.constant 0 : i32
    %c0_i32_0 = arith.constant 0 : i32
    %c0_i32_1 = arith.constant 0 : i32
    return %c0_i32, %c0_i32_0 : i32, i32
  }
  func.func @transform_3(%arg0: i32) -> (i32, i32) {
    %c0_i32 = arith.constant 0 : i32
    %c0_i32_0 = arith.constant 0 : i32
    %c0_i32_1 = arith.constant 0 : i32
    return %c0_i32, %c0_i32_0 : i32, i32
  }
  func.func @transform_4(%arg0: i32) -> (i32, i32) {
    %c0_i32 = arith.constant 0 : i32
    %c0_i32_0 = arith.constant 0 : i32
    %c0_i32_1 = arith.constant 0 : i32
    return %c0_i32, %c0_i32_0 : i32, i32
  }
  func.func @transform_5(%arg0: i32) -> (i32, i32) {
    %c0_i32 = arith.constant 0 : i32
    %c0_i32_0 = arith.constant 0 : i32
    %c0_i32_1 = arith.constant 0 : i32
    return %c0_i32, %c0_i32_0 : i32, i32
  }
  func.func @transform_6(%arg0: i32) -> (i32, i32) {
    %c0_i32 = arith.constant 0 : i32
    %c0_i32_0 = arith.constant 0 : i32
    %c0_i32_1 = arith.constant 0 : i32
    return %c0_i32, %c0_i32_0 : i32, i32
  }
  func.func @transform_7(%arg0: i32) -> (i32, i32, i32) {
    %c0_i32 = arith.constant 0 : i32
    %c0_i32_0 = arith.constant 0 : i32
    %c0_i32_1 = arith.constant 0 : i32
    return %arg0, %c0_i32, %c0_i32_0 : i32, i32, i32
  }
  func.func @transform_8(%arg0: i32) -> (i32, i32, i32) {
    %c0_i32 = arith.constant 0 : i32
    %c0_i32_0 = arith.constant 0 : i32
    %c0_i32_1 = arith.constant 0 : i32
    return %arg0, %c0_i32, %c0_i32_0 : i32, i32, i32
  }
}

</mosaic_0001>

<llo_original>
// kernel: hg_net_edge_forward_test.1
$region0: #{hg_net_edge_forward_test.1}
  #allocation0 [shape = 'u32[]', space=smem, size = 0x4, offset = 0x4, fixed_abs, tag = 'smem constant byte address 0x4 - core index']
  #allocation1 [shape = 'u32[144,128]{1,0:T(1,128)}', space=vmem, size = 0x12000, scoped, tag = 'internal scratch']
  %s0 = inlined_call_operand.vmem [shape: f32[2,3,256], index: 0, kind: input, shape index: {}]
  %s1 = inlined_call_operand.vmem [shape: f32[32,3], index: 1, kind: input, shape index: {}]
  %s2 = inlined_call_operand.vmem [shape: f32[32,1], index: 2, kind: input, shape index: {}]
  %s3 = inlined_call_operand.vmem [shape: f32[32,288], index: 3, kind: input, shape index: {}]
  %s4 = inlined_call_operand.vmem [shape: f32[32,1], index: 4, kind: input, shape index: {}]
  %s5 = inlined_call_operand.vmem [shape: f32[10,32], index: 5, kind: input, shape index: {}]
  %s6 = inlined_call_operand.vmem [shape: f32[10,1], index: 6, kind: input, shape index: {}]
  %s7 = inlined_call_operand.vmem [shape: f32[2,10,256], index: 7, kind: output, shape index: {0}]
  %s8 = inlined_call_operand.vmem [shape: f32[2,2,256], index: 8, kind: output, shape index: {1}]
  %9 = xla_tuple %s7, %s8
  %s10 = sld [smem:[#allocation0]]
  $region69: #{hg_net_edge_forward_test.1} parent=0
    _
  %s12 = ssub.s32 1, %s10
  %s13 = scalar_select 0, %s12, %s10
  loop: start=0, step=1, limit=4
  $region2: #{hg_net_edge_forward_test.1} parent=0 // loop_pre_header
    _
  $region3: #{hg_net_edge_forward_test.1} parent=0 // loop_header
    %s15 = sphi 0, %s19
    %p16 = scmp.ge.s32.totalorder %s15, 4
    %s25 = sphi 0, %s27
    %s28 = sphi 0, %s25
    %s29 = sphi 0, %s28
    %s45 = sphi 0, %s29
    %s49 = sphi 0, %s49
    %s51 = sphi 0, %s49
    %s52 = sphi 0, %s51
    %s66 = sphi 0, %s52
    %s70 = sphi 0, %s70
    %s72 = sphi 0, %s70
    %s73 = sphi 0, %s72
    %s87 = sphi 0, %s73
    %s91 = sphi 0, %s91
    %s93 = sphi 0, %s91
    %s94 = sphi 0, %s93
    %s108 = sphi 0, %s94
    %s112 = sphi 0, %s112
    %s114 = sphi 0, %s112
    %s115 = sphi 0, %s114
    %s129 = sphi 0, %s115
    %s133 = sphi 0, %s133
    %s135 = sphi 0, %s133
    %s136 = sphi 0, %s135
    %s150 = sphi 0, %s136
    %s154 = sphi 0, %s154
    %s156 = sphi 0, %s154
    %s157 = sphi 0, %s156
    %s171 = sphi 0, %s157
    %s177 = sphi 0, %s179
    %s180 = sphi 0, %s177
    %s181 = sphi 0, %s180
    %s197 = sphi 0, %s181
    %s203 = sphi 0, %s205
    %s206 = sphi 0, %s203
    %s207 = sphi 0, %s206
    %s223 = sphi 0, %s207
  $region4: #{hg_net_edge_forward_test.1} parent=0 // loop_header_branch
    %18 = sbr.rel (%p16) target = $region8
  $region5: #{hg_net_edge_forward_test.1} parent=0 // loop_body
    %s20 = ssub.s32 %s15, 1
    %s21 = ssub.s32 %s15, 2
    %s22 = sadd.s32 %s15, 1
    %s23 = ssub.s32 %s15, %s22
    %p24 = scmp.eq.s32.totalorder %s23, 0
    %s26 = sadd.s32 %s25, 1
    %s27 = scalar_select %p24, %s25, %s26
    %p30 = pneg %p24
    %p31 = scmp.eq.s32.totalorder %s15, 1
    %p32 = por %p30, %p31
    %p33 = scmp.ne.s32.totalorder %s25, %s28
    %p34 = scmp.eq.s32.totalorder %s15, 0
    %p35 = por %p33, %p34
    %p36 = scmp.ne.s32.totalorder %s25, %s28
    %p37 = scmp.eq.s32.totalorder %s20, 1
    %p38 = por %p36, %p37
    %p39 = scmp.ne.s32.totalorder %s28, %s29
    %p40 = scmp.eq.s32.totalorder %s20, 0
    %p41 = por %p39, %p40
    %p42 = scmp.ne.s32.totalorder %s28, %s29
    %p43 = scmp.eq.s32.totalorder %s21, 1
    %p44 = por %p42, %p43
    %p46 = scmp.ne.s32.totalorder %s29, %s45
    %p47 = scmp.eq.s32.totalorder %s21, 0
    %p48 = por %p46, %p47
    %s50 = sadd.s32 %s49, 1
    %p53 = scmp.eq.s32.totalorder %s15, 1
    %p54 = scmp.ne.s32.totalorder %s49, %s51
    %p55 = scmp.eq.s32.totalorder %s15, 0
    %p56 = por %p54, %p55
    %p57 = scmp.ne.s32.totalorder %s49, %s51
    %p58 = scmp.eq.s32.totalorder %s20, 1
    %p59 = por %p57, %p58
    %p60 = scmp.ne.s32.totalorder %s51, %s52
    %p61 = scmp.eq.s32.totalorder %s20, 0
    %p62 = por %p60, %p61
    %p63 = scmp.ne.s32.totalorder %s51, %s52
    %p64 = scmp.eq.s32.totalorder %s21, 1
    %p65 = por %p63, %p64
    %p67 = scmp.ne.s32.totalorder %s52, %s66
    %p68 = scmp.eq.s32.totalorder %s21, 0
    %p69 = por %p67, %p68
    %s71 = sadd.s32 %s70, 1
    %p74 = scmp.eq.s32.totalorder %s15, 1
    %p75 = scmp.ne.s32.totalorder %s70, %s72
    %p76 = scmp.eq.s32.totalorder %s15, 0
    %p77 = por %p75, %p76
    %p78 = scmp.ne.s32.totalorder %s70, %s72
    %p79 = scmp.eq.s32.totalorder %s20, 1
    %p80 = por %p78, %p79
    %p81 = scmp.ne.s32.totalorder %s72, %s73
    %p82 = scmp.eq.s32.totalorder %s20, 0
    %p83 = por %p81, %p82
    %p84 = scmp.ne.s32.totalorder %s72, %s73
    %p85 = scmp.eq.s32.totalorder %s21, 1
    %p86 = por %p84, %p85
    %p88 = scmp.ne.s32.totalorder %s73, %s87
    %p89 = scmp.eq.s32.totalorder %s21, 0
    %p90 = por %p88, %p89
    %s92 = sadd.s32 %s91, 1
    %p95 = scmp.eq.s32.totalorder %s15, 1
    %p96 = scmp.ne.s32.totalorder %s91, %s93
    %p97 = scmp.eq.s32.totalorder %s15, 0
    %p98 = por %p96, %p97
    %p99 = scmp.ne.s32.totalorder %s91, %s93
    %p100 = scmp.eq.s32.totalorder %s20, 1
    %p101 = por %p99, %p100
    %p102 = scmp.ne.s32.totalorder %s93, %s94
    %p103 = scmp.eq.s32.totalorder %s20, 0
    %p104 = por %p102, %p103
    %p105 = scmp.ne.s32.totalorder %s93, %s94
    %p106 = scmp.eq.s32.totalorder %s21, 1
    %p107 = por %p105, %p106
    %p109 = scmp.ne.s32.totalorder %s94, %s108
    %p110 = scmp.eq.s32.totalorder %s21, 0
    %p111 = por %p109, %p110
    %s113 = sadd.s32 %s112, 1
    %p116 = scmp.eq.s32.totalorder %s15, 1
    %p117 = scmp.ne.s32.totalorder %s112, %s114
    %p118 = scmp.eq.s32.totalorder %s15, 0
    %p119 = por %p117, %p118
    %p120 = scmp.ne.s32.totalorder %s112, %s114
    %p121 = scmp.eq.s32.totalorder %s20, 1
    %p122 = por %p120, %p121
    %p123 = scmp.ne.s32.totalorder %s114, %s115
    %p124 = scmp.eq.s32.totalorder %s20, 0
    %p125 = por %p123, %p124
    %p126 = scmp.ne.s32.totalorder %s114, %s115
    %p127 = scmp.eq.s32.totalorder %s21, 1
    %p128 = por %p126, %p127
    %p130 = scmp.ne.s32.totalorder %s115, %s129
    %p131 = scmp.eq.s32.totalorder %s21, 0
    %p132 = por %p130, %p131
    %s134 = sadd.s32 %s133, 1
    %p137 = scmp.eq.s32.totalorder %s15, 1
    %p138 = scmp.ne.s32.totalorder %s133, %s135
    %p139 = scmp.eq.s32.totalorder %s15, 0
    %p140 = por %p138, %p139
    %p141 = scmp.ne.s32.totalorder %s133, %s135
    %p142 = scmp.eq.s32.totalorder %s20, 1
    %p143 = por %p141, %p142
    %p144 = scmp.ne.s32.totalorder %s135, %s136
    %p145 = scmp.eq.s32.totalorder %s20, 0
    %p146 = por %p144, %p145
    %p147 = scmp.ne.s32.totalorder %s135, %s136
    %p148 = scmp.eq.s32.totalorder %s21, 1
    %p149 = por %p147, %p148
    %p151 = scmp.ne.s32.totalorder %s136, %s150
    %p152 = scmp.eq.s32.totalorder %s21, 0
    %p153 = por %p151, %p152
    %s155 = sadd.s32 %s154, 1
    %p158 = scmp.eq.s32.totalorder %s15, 1
    %p159 = scmp.ne.s32.totalorder %s154, %s156
    %p160 = scmp.eq.s32.totalorder %s15, 0
    %p161 = por %p159, %p160
    %p162 = scmp.ne.s32.totalorder %s154, %s156
    %p163 = scmp.eq.s32.totalorder %s20, 1
    %p164 = por %p162, %p163
    %p165 = scmp.ne.s32.totalorder %s156, %s157
    %p166 = scmp.eq.s32.totalorder %s20, 0
    %p167 = por %p165, %p166
    %p168 = scmp.ne.s32.totalorder %s156, %s157
    %p169 = scmp.eq.s32.totalorder %s21, 1
    %p170 = por %p168, %p169
    %p172 = scmp.ne.s32.totalorder %s157, %s171
    %p173 = scmp.eq.s32.totalorder %s21, 0
    %p174 = por %p172, %p173
    %s175 = ssub.s32 %s15, %s22
    %p176 = scmp.eq.s32.totalorder %s175, 0
    %s178 = sadd.s32 %s177, 1
    %s179 = scalar_select %p176, %s177, %s178
    %p182 = pneg %p176
    %p183 = scmp.eq.s32.totalorder %s15, 1
    %p184 = por %p182, %p183
    %p185 = scmp.ne.s32.totalorder %s177, %s180
    %p186 = scmp.eq.s32.totalorder %s15, 0
    %p187 = por %p185, %p186
    %p188 = scmp.ne.s32.totalorder %s177, %s180
    %p189 = scmp.eq.s32.totalorder %s20, 1
    %p190 = por %p188, %p189
    %p191 = scmp.ne.s32.totalorder %s180, %s181
    %p192 = scmp.eq.s32.totalorder %s20, 0
    %p193 = por %p191, %p192
    %p194 = scmp.ne.s32.totalorder %s180, %s181
    %p195 = scmp.eq.s32.totalorder %s21, 1
    %p196 = por %p194, %p195
    %p198 = scmp.ne.s32.totalorder %s181, %s197
    %p199 = scmp.eq.s32.totalorder %s21, 0
    %p200 = por %p198, %p199
    %s201 = ssub.s32 %s15, %s22
    %p202 = scmp.eq.s32.totalorder %s201, 0
    %s204 = sadd.s32 %s203, 1
    %s205 = scalar_select %p202, %s203, %s204
    %p208 = pneg %p202
    %p209 = scmp.eq.s32.totalorder %s15, 1
    %p210 = por %p208, %p209
    %p211 = scmp.ne.s32.totalorder %s203, %s206
    %p212 = scmp.eq.s32.totalorder %s15, 0
    %p213 = por %p211, %p212
    %p214 = scmp.ne.s32.totalorder %s203, %s206
    %p215 = scmp.eq.s32.totalorder %s20, 1
    %p216 = por %p214, %p215
    %p217 = scmp.ne.s32.totalorder %s206, %s207
    %p218 = scmp.eq.s32.totalorder %s20, 0
    %p219 = por %p217, %p218
    %p220 = scmp.ne.s32.totalorder %s206, %s207
    %p221 = scmp.eq.s32.totalorder %s21, 1
    %p222 = por %p220, %p221
    %p224 = scmp.ne.s32.totalorder %s207, %s223
    %p225 = scmp.eq.s32.totalorder %s21, 0
    %p226 = por %p224, %p225
    %p227 = scmp.le.s32.totalorder 1, %s15
    %p228 = scmp.lt.s32.totalorder %s15, 3
    %p229 = pnand %p227, %p228
    %p230 = pneg %p229
    // Predicated region
    $region9: #{hg_net_edge_forward_test.1} parent=5 // pred_check
      _
    $region10: #{hg_net_edge_forward_test.1} parent=5 // pred_check_branch
      %232 = sbr.rel (%p229) target = $region12
    $region11: #{hg_net_edge_forward_test.1} parent=5 // pred_region
      %s233 = ssub.s32 %s15, 1
      // Predicated region
      $region13: #{hg_net_edge_forward_test.1} parent=11 // pred_check
        %p234 = pneg %p62
      $region14: #{hg_net_edge_forward_test.1} parent=11 // pred_check_branch
        %236 = sbr.rel (%p234) target = $region16
      $region15: #{hg_net_edge_forward_test.1} parent=11 // pred_region
        _
      $region16: #{hg_net_edge_forward_test.1} parent=11 // pred_fallthru
        _
      // Predicated region
      $region17: #{hg_net_edge_forward_test.1} parent=11 // pred_check
        %p237 = pneg %p83
      $region18: #{hg_net_edge_forward_test.1} parent=11 // pred_check_branch
        %239 = sbr.rel (%p237) target = $region20
      $region19: #{hg_net_edge_forward_test.1} parent=11 // pred_region
        _
      $region20: #{hg_net_edge_forward_test.1} parent=11 // pred_fallthru
        _
      // Predicated region
      $region21: #{hg_net_edge_forward_test.1} parent=11 // pred_check
        %p240 = pneg %p104
      $region22: #{hg_net_edge_forward_test.1} parent=11 // pred_check_branch
        %242 = sbr.rel (%p240) target = $region24
      $region23: #{hg_net_edge_forward_test.1} parent=11 // pred_region
        _
      $region24: #{hg_net_edge_forward_test.1} parent=11 // pred_fallthru
        _
      // Predicated region
      $region25: #{hg_net_edge_forward_test.1} parent=11 // pred_check
        %p243 = pneg %p125
      $region26: #{hg_net_edge_forward_test.1} parent=11 // pred_check_branch
        %245 = sbr.rel (%p243) target = $region28
      $region27: #{hg_net_edge_forward_test.1} parent=11 // pred_region
        _
      $region28: #{hg_net_edge_forward_test.1} parent=11 // pred_fallthru
        _
      // Predicated region
      $region29: #{hg_net_edge_forward_test.1} parent=11 // pred_check
        %p246 = pneg %p146
      $region30: #{hg_net_edge_forward_test.1} parent=11 // pred_check_branch
        %248 = sbr.rel (%p246) target = $region32
      $region31: #{hg_net_edge_forward_test.1} parent=11 // pred_region
        _
      $region32: #{hg_net_edge_forward_test.1} parent=11 // pred_fallthru
        _
      // Predicated region
      $region33: #{hg_net_edge_forward_test.1} parent=11 // pred_check
        %p249 = pneg %p167
      $region34: #{hg_net_edge_forward_test.1} parent=11 // pred_check_branch
        %251 = sbr.rel (%p249) target = $region36
      $region35: #{hg_net_edge_forward_test.1} parent=11 // pred_region
        _
      $region36: #{hg_net_edge_forward_test.1} parent=11 // pred_fallthru
        _
    $region12: #{hg_net_edge_forward_test.1} parent=5 // pred_fallthru
      _
    %p252 = scmp.lt.s32.totalorder %s15, 2
    // Predicated region
    $region37: #{hg_net_edge_forward_test.1} parent=5 // pred_check
      %p253 = pneg %p252
    $region38: #{hg_net_edge_forward_test.1} parent=5 // pred_check_branch
      %255 = sbr.rel (%p253) target = $region40
    $region39: #{hg_net_edge_forward_test.1} parent=5 // pred_region
      // Predicated region
      $region41: #{hg_net_edge_forward_test.1} parent=39 // pred_check
        %p256 = pneg %p35
      $region42: #{hg_net_edge_forward_test.1} parent=39 // pred_check_branch
        %258 = sbr.rel (%p256) target = $region44
      $region43: #{hg_net_edge_forward_test.1} parent=39 // pred_region
        %p259 = scmp.lt.s32.totalorder %s15, 1
        %s260 = scalar_select %p259, %s15, 1
        %s261 = smul.addr %s260, 2
        %s262 = smul.addr %s261, 4
        %s263 = scalar_lea.vmem %s0, %s262
      $region44: #{hg_net_edge_forward_test.1} parent=39 // pred_fallthru
        _
    $region40: #{hg_net_edge_forward_test.1} parent=5 // pred_fallthru
      _
    %p264 = scmp.le.s32.totalorder 1, %s15
    %p265 = scmp.lt.s32.totalorder %s15, 3
    %p266 = pnand %p264, %p265
    %p267 = pneg %p266
    // Predicated region
    $region45: #{hg_net_edge_forward_test.1} parent=5 // pred_check
      _
    $region46: #{hg_net_edge_forward_test.1} parent=5 // pred_check_branch
      %269 = sbr.rel (%p266) target = $region48
    $region47: #{hg_net_edge_forward_test.1} parent=5 // pred_region
      %s270 = ssub.s32 %s15, 1
      %p271 = scmp.lt.s32.totalorder %s20, 1
      %s272 = scalar_select %p271, %s20, 1
      %s273 = smul.addr %s272, 2
      %s274 = smul.addr %s273, 4
      %s275 = scalar_lea.vmem %s0, %s274
      %p276 = pneg %p41
      %p277 = pneg %p38
      %p278 = pneg %p62
      %p279 = pneg %p59
      %p280 = pneg %p83
      %p281 = pneg %p80
      %p282 = pneg %p104
      %p283 = pneg %p101
      %p284 = pneg %p125
      %p285 = pneg %p122
      %p286 = pneg %p146
      %p287 = pneg %p143
      %p288 = pneg %p167
      %p289 = pneg %p164
      %p290 = pneg %p193
      %p291 = pneg %p190
      %p292 = scmp.lt.s32.totalorder %s20, 1
      %s293 = scalar_select %p292, %s20, 1
      %s294 = smul.addr %s293, 4
      %s295 = smul.addr %s294, 8
      %s296 = scalar_lea.vmem %s7, %s295
      %p297 = pneg %p219
      %p298 = pneg %p216
      %p299 = scmp.lt.s32.totalorder %s20, 1
      %s300 = scalar_select %p299, %s20, 1
      %s301 = smul.addr %s300, 2
      %s302 = smul.addr %s301, 2
      %s303 = scalar_lea.vmem %s8, %s302
      %p304 = scmp.lt.s32.totalorder %s20, 1
      %s305 = scalar_select %p304, %s20, 1
      %s306 = smul.addr %s305, 2
      %s307 = smul.addr %s306, 4
      %s308 = scalar_lea.vmem %s0, %s307
      %p309 = scmp.lt.s32.totalorder %s20, 1
      %s310 = scalar_select %p309, %s20, 1
      %s311 = smul.addr %s310, 4
      %s312 = smul.addr %s311, 8
      %s313 = scalar_lea.vmem %s7, %s312
      %p314 = scmp.lt.s32.totalorder %s20, 1
      %s315 = scalar_select %p314, %s20, 1
      %s316 = smul.addr %s315, 2
      %s317 = smul.addr %s316, 2
      %s318 = scalar_lea.vmem %s8, %s317
      %v319 = vlaneseq
      %v320 = vand.u32 %v319, 127
      %v321 = vadd.s32 %v320, 128
      %vm322 = vcmp.lt.s32.totalorder %v320, 0
      %v323 = vsub.s32 0, %v320
      %v324 = vsel %vm322, %v323, %v320
      %v325 = vshrl.u32 %v324, 4
      %v326 = vand.u32 %v324, 15
      %v327 = vsub.s32 0, %v326
      %v328 = vsel %vm322, %v327, %v326
      %vm329 = vcmp.lt.s32.totalorder %v321, 0
      %v330 = vsub.s32 0, %v321
      %v331 = vsel %vm329, %v330, %v321
      %v332 = vshrl.u32 %v331, 4
      %v333 = vand.u32 %v331, 15
      %v334 = vsub.s32 0, %v333
      %v335 = vsel %vm329, %v334, %v333
      %vm336 = vcmp.ne.s32.totalorder %v328, 0
      %vm337 = vcmp.ne.s32.totalorder %v335, 0
      %vm338 = vcmp.lt.s32.totalorder %v328, 0
      %vm339 = vcmp.lt.s32.totalorder %v335, 0
      %vm340 = vmand %vm338, %vm336
      %vm341 = vmand %vm339, %vm337
      %v342 = vadd.s32 %v328, 16
      %v343 = vadd.s32 %v335, 16
      %v344 = vsel %vm340, %v342, %v328
      %v345 = vsel %vm341, %v343, %v335
      %vm346 = vcmp.ge.s32.totalorder %v344, 1
      %vm347 = vcmp.ge.s32.totalorder %v345, 1
      %v348 = vsel %vm346, 1, 0
      %v349 = vsel %vm347, 1, 0
      %v350 = vcvt.s32.f32 %v348
      %v351 = vcvt.s32.f32 %v349
      %vm352 = vcmp.lt.s32.totalorder %v344, 15
      %vm353 = vcmp.lt.s32.totalorder %v345, 15
      %v354 = vsel %vm352, 1, 0
      %v355 = vsel %vm353, 1, 0
      %v356 = vcvt.s32.f32 %v354
      %v357 = vcvt.s32.f32 %v355
      %v358 = vld [vmem:[%s1] sm:$0xff]
      %v359 = vld [vmem:[%s1 + $0x8] sm:$0xff]
      %v360 = vld [vmem:[%s1 + $0x10] sm:$0xff]
      %v361 = vld [vmem:[%s1 + $0x18] sm:$0xff]
      %v362 = vld [vmem:[%s2] sm:$0xff]
      %v363 = vld [vmem:[%s2 + $0x8] sm:$0xff]
      %v364 = vld [vmem:[%s2 + $0x10] sm:$0xff]
      %v365 = vld [vmem:[%s2 + $0x18] sm:$0xff]
      %v366 = vld [vmem:[%s3] sm:$0xff]
      %v367 = vld [vmem:[%s3 + $0x8] sm:$0xff]
      %v368 = vld [vmem:[%s3 + $0x10] sm:$0xff]
      %v369 = vld [vmem:[%s3 + $0x18] sm:$0xff]
      %v370 = vld [vmem:[%s3 + $0x20] sm:$0xff]
      %v371 = vld [vmem:[%s3 + $0x28] sm:$0xff]
      %v372 = vld [vmem:[%s3 + $0x30] sm:$0xff]
      %v373 = vld [vmem:[%s3 + $0x38] sm:$0xff]
      %v374 = vld [vmem:[%s3 + $0x40] sm:$0xff]
      %v375 = vld [vmem:[%s3 + $0x48] sm:$0xff]
      %v376 = vld [vmem:[%s3 + $0x50] sm:$0xff]
      %v377 = vld [vmem:[%s3 + $0x58] sm:$0xff]
      %v378 = vld [vmem:[%s4] sm:$0xff]
      %v379 = vld [vmem:[%s4 + $0x8] sm:$0xff]
      %v380 = vld [vmem:[%s4 + $0x10] sm:$0xff]
      %v381 = vld [vmem:[%s4 + $0x18] sm:$0xff]
      %v382 = vld [vmem:[%s5] sm:$0xff]
      %v383 = vld [vmem:[%s5 + $0x8] sm:$0x3]
      %v384 = vld [vmem:[%s6] sm:$0xff]
      %v385 = vld [vmem:[%s6 + $0x8] sm:$0x3]
      %v386 = vld [vmem:[%s308] sm:$0x77]
      %388 = vset.pattern.permute.xlu0 0
      %389 = vperm.xlu0 %388, %v362
      %v390 = vpop.permute.xlu0 %389
      %393 = vset.pattern.permute.xlu0 0
      %394 = vperm.xlu0 %393, %v363
      %v395 = vpop.permute.xlu0 %394
      %398 = vset.pattern.permute.xlu0 0
      %399 = vperm.xlu0 %398, %v364
      %v400 = vpop.permute.xlu0 %399
      %403 = vset.pattern.permute.xlu0 0
      %404 = vperm.xlu0 %403, %v365
      %v405 = vpop.permute.xlu0 %404
      %v408 = vcombine.high %v386, %v386
      %vm409 = vcmask 23552
      %v411 = vsel %vm409, %v358, 0
      %v414 = vsel %vm409, %v359, 0
      %v417 = vsel %vm409, %v360, 0
      %v420 = vsel %vm409, %v361, 0
      %vm422 = vcmask 1042432
      %v423 = vsel %vm422, %v386, 0
      %v425 = vsel %vm422, %v408, 0
      %427 = vmatprep.subr.mxu0 %v425
      %428 = vmatpush1.msra.mxu0 %v423
      %429 = vmatprep.subr.mxu0 0.0
      %430 = vmatpush1.msra.mxu0 0.0
      %431 = vmatprep.subr.mxu0 0.0
      %432 = vmatpush1.msra.mxu0 0.0
      %433 = vmatprep.subr.mxu0 0.0
      %434 = vmatpush1.msra.mxu0 0.0
      %435 = vmatprep.subr.mxu0 0.0
      %436 = vmatpush1.msra.mxu0 0.0
      %437 = vmatprep.subr.mxu0 0.0
      %438 = vmatpush1.msra.mxu0 0.0
      %439 = vmatprep.subr.mxu0 0.0
      %440 = vmatpush1.msra.mxu0 0.0
      %441 = vmatprep.subr.mxu0 0.0
      %442 = vmatpush1.msra.mxu0 0.0
      %443 = vmatprep.subr.mxu0 0.0
      %444 = vmatpush1.msra.mxu0 0.0
      %445 = vmatprep.subr.mxu0 0.0
      %446 = vmatpush1.msra.mxu0 0.0
      %447 = vmatprep.subr.mxu0 0.0
      %448 = vmatpush1.msra.mxu0 0.0
      %449 = vmatprep.subr.mxu0 0.0
      %450 = vmatpush1.msra.mxu0 0.0
      %451 = vmatprep.subr.mxu0 0.0
      %452 = vmatpush1.msra.mxu0 0.0
      %453 = vmatprep.subr.mxu0 0.0
      %454 = vmatpush1.msra.mxu0 0.0
      %455 = vmatprep.subr.mxu0 0.0
      %456 = vmatpush1.msra.mxu0 0.0
      %457 = vmatprep.subr.mxu0 0.0
      %458 = vmatpush1.msra.mxu0 0.0
      %459 = vmatprep.subr.mxu0 0.0
      %460 = vmatpush1.msra.mxu0 0.0
      %461 = vmatprep.subr.mxu0 0.0
      %462 = vmatpush1.msra.mxu0 0.0
      %463 = vmatprep.subr.mxu0 0.0
      %464 = vmatpush1.msra.mxu0 0.0
      %465 = vmatprep.subr.mxu0 0.0
      %466 = vmatpush1.msra.mxu0 0.0
      %467 = vmatprep.subr.mxu0 0.0
      %468 = vmatpush1.msra.mxu0 0.0
      %469 = vmatprep.subr.mxu0 0.0
      %470 = vmatpush1.msra.mxu0 0.0
      %471 = vmatprep.subr.mxu0 0.0
      %472 = vmatpush1.msra.mxu0 0.0
      %473 = vmatprep.subr.mxu0 0.0
      %474 = vmatpush1.msra.mxu0 0.0
      %475 = vmatprep.subr.mxu0 0.0
      %476 = vmatpush1.msra.mxu0 0.0
      %477 = vmatprep.subr.mxu0 0.0
      %478 = vmatpush1.msra.mxu0 0.0
      %479 = vmatprep.subr.mxu0 0.0
      %480 = vmatpush1.msra.mxu0 0.0
      %481 = vmatprep.subr.mxu0 0.0
      %482 = vmatpush1.msra.mxu0 0.0
      %483 = vmatprep.subr.mxu0 0.0
      %484 = vmatpush1.msra.mxu0 0.0
      %485 = vmatprep.subr.mxu0 0.0
      %486 = vmatpush1.msra.mxu0 0.0
      %487 = vmatprep.subr.mxu0 0.0
      %488 = vmatpush1.msra.mxu0 0.0
      %489 = vmatprep.subr.mxu0 0.0
      %490 = vmatpush1.msra.mxu0 0.0
      %491 = vmatprep.mubr.f32.mxu0 0.0
      %492 = vmatmul.mubr.f32.gmra.mrb[0].mxu0 %v411
      %v493 = vpop.f32.mrb[0].mxu0
      %v494 = vadd.f32 %v390, %v493
      %v495 = vpop.f32.mrb[0].mxu0
      %v496 = vadd.f32 %v390, %v495
      %497 = vmatprep.mubr.f32.mxu0 0.0
      %498 = vmatmul.mubr.f32.gmra.mrb[0].mxu0 %v414
      %v499 = vpop.f32.mrb[0].mxu0
      %v500 = vadd.f32 %v395, %v499
      %v501 = vpop.f32.mrb[0].mxu0
      %v502 = vadd.f32 %v395, %v501
      %503 = vmatprep.mubr.f32.mxu0 0.0
      %504 = vmatmul.mubr.f32.gmra.mrb[0].mxu0 %v417
      %v505 = vpop.f32.mrb[0].mxu0
      %v506 = vadd.f32 %v400, %v505
      %v507 = vpop.f32.mrb[0].mxu0
      %v508 = vadd.f32 %v400, %v507
      %509 = vmatprep.mubr.f32.mxu0 0.0
      %510 = vmatmul.mubr.f32.gmra.mrb[0].mxu0 %v420
      %v511 = vpop.f32.mrb[0].mxu0
      %v512 = vadd.f32 %v405, %v511
      %v513 = vpop.f32.mrb[0].mxu0
      %v514 = vadd.f32 %v405, %v513
      %515 = vdwg.mxu0
      %v516 = vmax.f32 %v494, 0.0
      %v517 = vmax.f32 %v496, 0.0
      %v518 = vmax.f32 %v500, 0.0
      %v519 = vmax.f32 %v502, 0.0
      %v520 = vmax.f32 %v506, 0.0
      %v521 = vmax.f32 %v508, 0.0
      %v522 = vmax.f32 %v512, 0.0
      %v523 = vmax.f32 %v514, 0.0
      %532 = vrot.lane.b32.xlu0 %v516, 17
      %v533 = vpop.permute.xlu0 %532
      %534 = vrot.lane.b32.xlu0 %v517, 17
      %v535 = vpop.permute.xlu0 %534
      %536 = vrot.lane.b32.xlu0 %v518, 17
      %v537 = vpop.permute.xlu0 %536
      %538 = vrot.lane.b32.xlu0 %v519, 17
      %v539 = vpop.permute.xlu0 %538
      %540 = vrot.lane.b32.xlu0 %v520, 17
      %v541 = vpop.permute.xlu0 %540
      %542 = vrot.lane.b32.xlu0 %v521, 17
      %v543 = vpop.permute.xlu0 %542
      %544 = vrot.lane.b32.xlu0 %v522, 17
      %v545 = vpop.permute.xlu0 %544
      %546 = vrot.lane.b32.xlu0 %v523, 17
      %v547 = vpop.permute.xlu0 %546
      %vm548 = vcmask 138240
      %v549 = vsel %vm548, %v533, %v535
      %v550 = vsel %vm548, %v537, %v539
      %v551 = vsel %vm548, %v541, %v543
      %v552 = vsel %vm548, %v545, %v547
      %v561 = vsel %vm548, 0.0, %v533
      %v562 = vsel %vm548, 0.0, %v537
      %v563 = vsel %vm548, 0.0, %v541
      %v564 = vsel %vm548, 0.0, %v545
      %v565 = vmul.f32 %v561, %v350
      %v566 = vmul.f32 %v549, %v351
      %v567 = vmul.f32 %v562, %v350
      %v568 = vmul.f32 %v550, %v351
      %v569 = vmul.f32 %v563, %v350
      %v570 = vmul.f32 %v551, %v351
      %v571 = vmul.f32 %v564, %v350
      %v572 = vmul.f32 %v552, %v351
      %573 = vrot.lane.b32.xlu0 %v516, 16
      %v574 = vpop.permute.xlu0 %573
      %575 = vrot.lane.b32.xlu0 %v517, 16
      %v576 = vpop.permute.xlu0 %575
      %577 = vrot.lane.b32.xlu0 %v518, 16
      %v578 = vpop.permute.xlu0 %577
      %579 = vrot.lane.b32.xlu0 %v519, 16
      %v580 = vpop.permute.xlu0 %579
      %581 = vrot.lane.b32.xlu0 %v520, 16
      %v582 = vpop.permute.xlu0 %581
      %583 = vrot.lane.b32.xlu0 %v521, 16
      %v584 = vpop.permute.xlu0 %583
      %585 = vrot.lane.b32.xlu0 %v522, 16
      %v586 = vpop.permute.xlu0 %585
      %587 = vrot.lane.b32.xlu0 %v523, 16
      %v588 = vpop.permute.xlu0 %587
      %vm589 = vcmask 130048
      %v590 = vsel %vm589, %v574, %v576
      %v591 = vsel %vm589, %v578, %v580
      %v592 = vsel %vm589, %v582, %v584
      %v593 = vsel %vm589, %v586, %v588
      %v602 = vsel %vm589, 0.0, %v574
      %v603 = vsel %vm589, 0.0, %v578
      %v604 = vsel %vm589, 0.0, %v582
      %v605 = vsel %vm589, 0.0, %v586
      %606 = vrot.lane.b32.xlu0 %v516, 15
      %v607 = vpop.permute.xlu0 %606
      %608 = vrot.lane.b32.xlu0 %v517, 15
      %v609 = vpop.permute.xlu0 %608
      %610 = vrot.lane.b32.xlu0 %v518, 15
      %v611 = vpop.permute.xlu0 %610
      %612 = vrot.lane.b32.xlu0 %v519, 15
      %v613 = vpop.permute.xlu0 %612
      %614 = vrot.lane.b32.xlu0 %v520, 15
      %v615 = vpop.permute.xlu0 %614
      %616 = vrot.lane.b32.xlu0 %v521, 15
      %v617 = vpop.permute.xlu0 %616
      %618 = vrot.lane.b32.xlu0 %v522, 15
      %v619 = vpop.permute.xlu0 %618
      %620 = vrot.lane.b32.xlu0 %v523, 15
      %v621 = vpop.permute.xlu0 %620
      %vm622 = vcmask 121856
      %v623 = vsel %vm622, %v607, %v609
      %v624 = vsel %vm622, %v611, %v613
      %v625 = vsel %vm622, %v615, %v617
      %v626 = vsel %vm622, %v619, %v621
      %v635 = vsel %vm622, 0.0, %v607
      %v636 = vsel %vm622, 0.0, %v611
      %v637 = vsel %vm622, 0.0, %v615
      %v638 = vsel %vm622, 0.0, %v619
      %v639 = vmul.f32 %v635, %v356
      %v640 = vmul.f32 %v623, %v357
      %v641 = vmul.f32 %v636, %v356
      %v642 = vmul.f32 %v624, %v357
      %v643 = vmul.f32 %v637, %v356
      %v644 = vmul.f32 %v625, %v357
      %v645 = vmul.f32 %v638, %v356
      %v646 = vmul.f32 %v626, %v357
      %647 = vrot.lane.b32.xlu0 %v516, 1
      %v648 = vpop.permute.xlu0 %647
      %649 = vrot.lane.b32.xlu0 %v517, 1
      %v650 = vpop.permute.xlu0 %649
      %651 = vrot.lane.b32.xlu0 %v518, 1
      %v652 = vpop.permute.xlu0 %651
      %653 = vrot.lane.b32.xlu0 %v519, 1
      %v654 = vpop.permute.xlu0 %653
      %655 = vrot.lane.b32.xlu0 %v520, 1
      %v656 = vpop.permute.xlu0 %655
      %657 = vrot.lane.b32.xlu0 %v521, 1
      %v658 = vpop.permute.xlu0 %657
      %659 = vrot.lane.b32.xlu0 %v522, 1
      %v660 = vpop.permute.xlu0 %659
      %661 = vrot.lane.b32.xlu0 %v523, 1
      %v662 = vpop.permute.xlu0 %661
      %vm663 = vcmask 7168
      %v664 = vsel %vm663, %v648, %v650
      %v665 = vsel %vm663, %v652, %v654
      %v666 = vsel %vm663, %v656, %v658
      %v667 = vsel %vm663, %v660, %v662
      %v676 = vsel %vm663, 0.0, %v648
      %v677 = vsel %vm663, 0.0, %v652
      %v678 = vsel %vm663, 0.0, %v656
      %v679 = vsel %vm663, 0.0, %v660
      %v680 = vmul.f32 %v676, %v350
      %v681 = vmul.f32 %v664, %v351
      %v682 = vmul.f32 %v677, %v350
      %v683 = vmul.f32 %v665, %v351
      %v684 = vmul.f32 %v678, %v350
      %v685 = vmul.f32 %v666, %v351
      %v686 = vmul.f32 %v679, %v350
      %v687 = vmul.f32 %v667, %v351
      %688 = vrot.lane.b32.xlu0 %v516, 127
      %v689 = vpop.permute.xlu0 %688
      %690 = vrot.lane.b32.xlu0 %v517, 127
      %v691 = vpop.permute.xlu0 %690
      %692 = vrot.lane.b32.xlu0 %v518, 127
      %v693 = vpop.permute.xlu0 %692
      %694 = vrot.lane.b32.xlu0 %v519, 127
      %v695 = vpop.permute.xlu0 %694
      %696 = vrot.lane.b32.xlu0 %v520, 127
      %v697 = vpop.permute.xlu0 %696
      %698 = vrot.lane.b32.xlu0 %v521, 127
      %v699 = vpop.permute.xlu0 %698
      %700 = vrot.lane.b32.xlu0 %v522, 127
      %v701 = vpop.permute.xlu0 %700
      %702 = vrot.lane.b32.xlu0 %v523, 127
      %v703 = vpop.permute.xlu0 %702
      %vm704 = vcmask 1039360
      %v705 = vsel %vm704, %v689, %v691
      %v706 = vsel %vm704, %v693, %v695
      %v707 = vsel %vm704, %v697, %v699
      %v708 = vsel %vm704, %v701, %v703
      %v717 = vsel %vm704, %v691, 0.0
      %v718 = vsel %vm704, %v695, 0.0
      %v719 = vsel %vm704, %v699, 0.0
      %v720 = vsel %vm704, %v703, 0.0
      %v721 = vmul.f32 %v705, %v356
      %v722 = vmul.f32 %v717, %v357
      %v723 = vmul.f32 %v706, %v356
      %v724 = vmul.f32 %v718, %v357
      %v725 = vmul.f32 %v707, %v356
      %v726 = vmul.f32 %v719, %v357
      %v727 = vmul.f32 %v708, %v356
      %v728 = vmul.f32 %v720, %v357
      %729 = vrot.lane.b32.xlu0 %v516, 113
      %v730 = vpop.permute.xlu0 %729
      %731 = vrot.lane.b32.xlu0 %v517, 113
      %v732 = vpop.permute.xlu0 %731
      %733 = vrot.lane.b32.xlu0 %v518, 113
      %v734 = vpop.permute.xlu0 %733
      %735 = vrot.lane.b32.xlu0 %v519, 113
      %v736 = vpop.permute.xlu0 %735
      %737 = vrot.lane.b32.xlu0 %v520, 113
      %v738 = vpop.permute.xlu0 %737
      %739 = vrot.lane.b32.xlu0 %v521, 113
      %v740 = vpop.permute.xlu0 %739
      %741 = vrot.lane.b32.xlu0 %v522, 113
      %v742 = vpop.permute.xlu0 %741
      %743 = vrot.lane.b32.xlu0 %v523, 113
      %v744 = vpop.permute.xlu0 %743
      %vm745 = vcmask 924672
      %v746 = vsel %vm745, %v730, %v732
      %v747 = vsel %vm745, %v734, %v736
      %v748 = vsel %vm745, %v738, %v740
      %v749 = vsel %vm745, %v742, %v744
      %v758 = vsel %vm745, %v732, 0.0
      %v759 = vsel %vm745, %v736, 0.0
      %v760 = vsel %vm745, %v740, 0.0
      %v761 = vsel %vm745, %v744, 0.0
      %v762 = vmul.f32 %v746, %v350
      %v763 = vmul.f32 %v758, %v351
      %v764 = vmul.f32 %v747, %v350
      %v765 = vmul.f32 %v759, %v351
      %v766 = vmul.f32 %v748, %v350
      %v767 = vmul.f32 %v760, %v351
      %v768 = vmul.f32 %v749, %v350
      %v769 = vmul.f32 %v761, %v351
      %770 = vrot.lane.b32.xlu0 %v516, 112
      %v771 = vpop.permute.xlu0 %770
      %772 = vrot.lane.b32.xlu0 %v517, 112
      %v773 = vpop.permute.xlu0 %772
      %774 = vrot.lane.b32.xlu0 %v518, 112
      %v775 = vpop.permute.xlu0 %774
      %776 = vrot.lane.b32.xlu0 %v519, 112
      %v777 = vpop.permute.xlu0 %776
      %778 = vrot.lane.b32.xlu0 %v520, 112
      %v779 = vpop.permute.xlu0 %778
      %780 = vrot.lane.b32.xlu0 %v521, 112
      %v781 = vpop.permute.xlu0 %780
      %782 = vrot.lane.b32.xlu0 %v522, 112
      %v783 = vpop.permute.xlu0 %782
      %784 = vrot.lane.b32.xlu0 %v523, 112
      %v785 = vpop.permute.xlu0 %784
      %vm786 = vcmask 916480
      %v787 = vsel %vm786, %v771, %v773
      %v788 = vsel %vm786, %v775, %v777
      %v789 = vsel %vm786, %v779, %v781
      %v790 = vsel %vm786, %v783, %v785
      %v799 = vsel %vm786, %v773, 0.0
      %v800 = vsel %vm786, %v777, 0.0
      %v801 = vsel %vm786, %v781, 0.0
      %v802 = vsel %vm786, %v785, 0.0
      %803 = vrot.lane.b32.xlu0 %v516, 111
      %v804 = vpop.permute.xlu0 %803
      %805 = vrot.lane.b32.xlu0 %v517, 111
      %v806 = vpop.permute.xlu0 %805
      %807 = vrot.lane.b32.xlu0 %v518, 111
      %v808 = vpop.permute.xlu0 %807
      %809 = vrot.lane.b32.xlu0 %v519, 111
      %v810 = vpop.permute.xlu0 %809
      %811 = vrot.lane.b32.xlu0 %v520, 111
      %v812 = vpop.permute.xlu0 %811
      %813 = vrot.lane.b32.xlu0 %v521, 111
      %v814 = vpop.permute.xlu0 %813
      %815 = vrot.lane.b32.xlu0 %v522, 111
      %v816 = vpop.permute.xlu0 %815
      %817 = vrot.lane.b32.xlu0 %v523, 111
      %v818 = vpop.permute.xlu0 %817
      %vm819 = vcmask 908288
      %v820 = vsel %vm819, %v804, %v806
      %v821 = vsel %vm819, %v808, %v810
      %v822 = vsel %vm819, %v812, %v814
      %v823 = vsel %vm819, %v816, %v818
      %v832 = vsel %vm819, %v806, 0.0
      %v833 = vsel %vm819, %v810, 0.0
      %v834 = vsel %vm819, %v814, 0.0
      %v835 = vsel %vm819, %v818, 0.0
      %v836 = vmul.f32 %v820, %v356
      %v837 = vmul.f32 %v832, %v357
      %v838 = vmul.f32 %v821, %v356
      %v839 = vmul.f32 %v833, %v357
      %v840 = vmul.f32 %v822, %v356
      %v841 = vmul.f32 %v834, %v357
      %v842 = vmul.f32 %v823, %v356
      %v843 = vmul.f32 %v835, %v357
      %845 = vset.pattern.permute.xlu0 0
      %846 = vperm.xlu0 %845, %v378
      %v847 = vpop.permute.xlu0 %846
      %850 = vset.pattern.permute.xlu0 0
      %851 = vperm.xlu0 %850, %v379
      %v852 = vpop.permute.xlu0 %851
      %855 = vset.pattern.permute.xlu0 0
      %856 = vperm.xlu0 %855, %v380
      %v857 = vpop.permute.xlu0 %856
      %860 = vset.pattern.permute.xlu0 0
      %861 = vperm.xlu0 %860, %v381
      %v862 = vpop.permute.xlu0 %861
      %vm864 = vcmask 261120
      %v866 = vsel %vm864, %v368, 0
      %v869 = vsel %vm864, %v371, 0
      %v872 = vsel %vm864, %v374, 0
      %v875 = vsel %vm864, %v377, 0
      %877 = vmatprep.subr.mxu0 %v566
      %878 = vmatpush1.msra.mxu0 %v565
      %879 = vmatprep.subr.mxu0 %v568
      %880 = vmatpush1.msra.mxu0 %v567
      %881 = vmatprep.subr.mxu0 %v570
      %882 = vmatpush1.msra.mxu0 %v569
      %883 = vmatprep.subr.mxu0 %v572
      %884 = vmatpush1.msra.mxu0 %v571
      %885 = vmatprep.subr.mxu0 %v590
      %886 = vmatpush1.msra.mxu0 %v602
      %887 = vmatprep.subr.mxu0 %v591
      %888 = vmatpush1.msra.mxu0 %v603
      %889 = vmatprep.subr.mxu0 %v592
      %890 = vmatpush1.msra.mxu0 %v604
      %891 = vmatprep.subr.mxu0 %v593
      %892 = vmatpush1.msra.mxu0 %v605
      %893 = vmatprep.subr.mxu0 %v640
      %894 = vmatpush1.msra.mxu0 %v639
      %895 = vmatprep.subr.mxu0 %v642
      %896 = vmatpush1.msra.mxu0 %v641
      %897 = vmatprep.subr.mxu0 %v644
      %898 = vmatpush1.msra.mxu0 %v643
      %899 = vmatprep.subr.mxu0 %v646
      %900 = vmatpush1.msra.mxu0 %v645
      %901 = vmatprep.subr.mxu0 %v681
      %902 = vmatpush1.msra.mxu0 %v680
      %903 = vmatprep.subr.mxu0 %v683
      %904 = vmatpush1.msra.mxu0 %v682
      %905 = vmatprep.subr.mxu0 %v685
      %906 = vmatpush1.msra.mxu0 %v684
      %907 = vmatprep.subr.mxu0 %v687
      %908 = vmatpush1.msra.mxu0 %v686
      %909 = vmatprep.subr.mxu0 %v517
      %910 = vmatpush1.msra.mxu0 %v516
      %911 = vmatprep.subr.mxu0 %v519
      %912 = vmatpush1.msra.mxu0 %v518
      %913 = vmatprep.subr.mxu0 %v521
      %914 = vmatpush1.msra.mxu0 %v520
      %915 = vmatprep.subr.mxu0 %v523
      %916 = vmatpush1.msra.mxu0 %v522
      %917 = vmatprep.subr.mxu0 %v722
      %918 = vmatpush1.msra.mxu0 %v721
      %919 = vmatprep.subr.mxu0 %v724
      %920 = vmatpush1.msra.mxu0 %v723
      %921 = vmatprep.subr.mxu0 %v726
      %922 = vmatpush1.msra.mxu0 %v725
      %923 = vmatprep.subr.mxu0 %v728
      %924 = vmatpush1.msra.mxu0 %v727
      %925 = vmatprep.subr.mxu0 %v763
      %926 = vmatpush1.msra.mxu0 %v762
      %927 = vmatprep.subr.mxu0 %v765
      %928 = vmatpush1.msra.mxu0 %v764
      %929 = vmatprep.subr.mxu0 %v767
      %930 = vmatpush1.msra.mxu0 %v766
      %931 = vmatprep.subr.mxu0 %v769
      %932 = vmatpush1.msra.mxu0 %v768
      %933 = vmatprep.subr.mxu0 %v799
      %934 = vmatpush1.msra.mxu0 %v787
      %935 = vmatprep.subr.mxu0 %v800
      %936 = vmatpush1.msra.mxu0 %v788
      %937 = vmatprep.subr.mxu0 %v801
      %938 = vmatpush1.msra.mxu0 %v789
      %939 = vmatprep.subr.mxu0 %v802
      %940 = vmatpush1.msra.mxu0 %v790
      %941 = vmatprep.mubr.f32.mxu0 %v367
      %942 = vmatmul.mubr.f32.gmra.mrb[0].mxu0 %v366
      %v943 = vpop.f32.mrb[0].mxu0
      %v944 = vadd.f32 %v847, %v943
      %v945 = vpop.f32.mrb[0].mxu0
      %v946 = vadd.f32 %v847, %v945
      %947 = vmatprep.mubr.f32.mxu0 %v370
      %948 = vmatmul.mubr.f32.gmra.mrb[0].mxu0 %v369
      %v949 = vpop.f32.mrb[0].mxu0
      %v950 = vadd.f32 %v852, %v949
      %v951 = vpop.f32.mrb[0].mxu0
      %v952 = vadd.f32 %v852, %v951
      %953 = vmatprep.mubr.f32.mxu0 %v373
      %954 = vmatmul.mubr.f32.gmra.mrb[0].mxu0 %v372
      %v955 = vpop.f32.mrb[0].mxu0
      %v956 = vadd.f32 %v857, %v955
      %v957 = vpop.f32.mrb[0].mxu0
      %v958 = vadd.f32 %v857, %v957
      %959 = vmatprep.mubr.f32.mxu0 %v376
      %960 = vmatmul.mubr.f32.gmra.mrb[0].mxu0 %v375
      %v961 = vpop.f32.mrb[0].mxu0
      %v962 = vadd.f32 %v862, %v961
      %v963 = vpop.f32.mrb[0].mxu0
      %v964 = vadd.f32 %v862, %v963
      %965 = vdwg.mxu0
      %966 = vmatprep.subr.mxu0 %v837
      %967 = vmatpush1.msra.mxu0 %v836
      %968 = vmatprep.subr.mxu0 %v839
      %969 = vmatpush1.msra.mxu0 %v838
      %970 = vmatprep.subr.mxu0 %v841
      %971 = vmatpush1.msra.mxu0 %v840
      %972 = vmatprep.subr.mxu0 %v843
      %973 = vmatpush1.msra.mxu0 %v842
      %974 = vmatprep.subr.mxu0 0.0
      %975 = vmatpush1.msra.mxu0 0.0
      %976 = vmatprep.subr.mxu0 0.0
      %977 = vmatpush1.msra.mxu0 0.0
      %978 = vmatprep.subr.mxu0 0.0
      %979 = vmatpush1.msra.mxu0 0.0
      %980 = vmatprep.subr.mxu0 0.0
      %981 = vmatpush1.msra.mxu0 0.0
      %982 = vmatprep.subr.mxu0 0.0
      %983 = vmatpush1.msra.mxu0 0.0
      %984 = vmatprep.subr.mxu0 0.0
      %985 = vmatpush1.msra.mxu0 0.0
      %986 = vmatprep.subr.mxu0 0.0
      %987 = vmatpush1.msra.mxu0 0.0
      %988 = vmatprep.subr.mxu0 0.0
      %989 = vmatpush1.msra.mxu0 0.0
      %990 = vmatprep.subr.mxu0 0.0
      %991 = vmatpush1.msra.mxu0 0.0
      %992 = vmatprep.subr.mxu0 0.0
      %993 = vmatpush1.msra.mxu0 0.0
      %994 = vmatprep.subr.mxu0 0.0
      %995 = vmatpush1.msra.mxu0 0.0
      %996 = vmatprep.subr.mxu0 0.0
      %997 = vmatpush1.msra.mxu0 0.0
      %998 = vmatprep.subr.mxu0 0.0
      %999 = vmatpush1.msra.mxu0 0.0
      %1000 = vmatprep.subr.mxu0 0.0
      %1001 = vmatpush1.msra.mxu0 0.0
      %1002 = vmatprep.subr.mxu0 0.0
      %1003 = vmatpush1.msra.mxu0 0.0
      %1004 = vmatprep.subr.mxu0 0.0
      %1005 = vmatpush1.msra.mxu0 0.0
      %1006 = vmatprep.subr.mxu0 0.0
      %1007 = vmatpush1.msra.mxu0 0.0
      %1008 = vmatprep.subr.mxu0 0.0
      %1009 = vmatpush1.msra.mxu0 0.0
      %1010 = vmatprep.subr.mxu0 0.0
      %1011 = vmatpush1.msra.mxu0 0.0
      %1012 = vmatprep.subr.mxu0 0.0
      %1013 = vmatpush1.msra.mxu0 0.0
      %1014 = vmatprep.subr.mxu0 0.0
      %1015 = vmatpush1.msra.mxu0 0.0
      %1016 = vmatprep.subr.mxu0 0.0
      %1017 = vmatpush1.msra.mxu0 0.0
      %1018 = vmatprep.subr.mxu0 0.0
      %1019 = vmatpush1.msra.mxu0 0.0
      %1020 = vmatprep.subr.mxu0 0.0
      %1021 = vmatpush1.msra.mxu0 0.0
      %1022 = vmatprep.subr.mxu0 0.0
      %1023 = vmatpush1.msra.mxu0 0.0
      %1024 = vmatprep.subr.mxu0 0.0
      %1025 = vmatpush1.msra.mxu0 0.0
      %1026 = vmatprep.subr.mxu0 0.0
      %1027 = vmatpush1.msra.mxu0 0.0
      %1028 = vmatprep.subr.mxu0 0.0
      %1029 = vmatpush1.msra.mxu0 0.0
      %1030 = vmatprep.mubr.f32.mxu0 0.0
      %1031 = vmatmul.mubr.f32.gmra.mrb[0].mxu0 %v866
      %v1032 = vpop.f32.mrb[0].mxu0
      %v1033 = vadd.f32 %v944, %v1032
      %v1034 = vpop.f32.mrb[0].mxu0
      %v1035 = vadd.f32 %v946, %v1034
      %1036 = vmatprep.mubr.f32.mxu0 0.0
      %1037 = vmatmul.mubr.f32.gmra.mrb[0].mxu0 %v869
      %v1038 = vpop.f32.mrb[0].mxu0
      %v1039 = vadd.f32 %v950, %v1038
      %v1040 = vpop.f32.mrb[0].mxu0
      %v1041 = vadd.f32 %v952, %v1040
      %1042 = vmatprep.mubr.f32.mxu0 0.0
      %1043 = vmatmul.mubr.f32.gmra.mrb[0].mxu0 %v872
      %v1044 = vpop.f32.mrb[0].mxu0
      %v1045 = vadd.f32 %v956, %v1044
      %v1046 = vpop.f32.mrb[0].mxu0
      %v1047 = vadd.f32 %v958, %v1046
      %1048 = vmatprep.mubr.f32.mxu0 0.0
      %1049 = vmatmul.mubr.f32.gmra.mrb[0].mxu0 %v875
      %v1050 = vpop.f32.mrb[0].mxu0
      %v1051 = vadd.f32 %v962, %v1050
      %v1052 = vpop.f32.mrb[0].mxu0
      %v1053 = vadd.f32 %v964, %v1052
      %1054 = vdwg.mxu0
      %v1055 = vmax.f32 %v1033, 0.0
      %v1056 = vmax.f32 %v1035, 0.0
      %v1057 = vmax.f32 %v1039, 0.0
      %v1058 = vmax.f32 %v1041, 0.0
      %v1059 = vmax.f32 %v1045, 0.0
      %v1060 = vmax.f32 %v1047, 0.0
      %v1061 = vmax.f32 %v1051, 0.0
      %v1062 = vmax.f32 %v1053, 0.0
      %1064 = vset.pattern.permute.xlu0 0
      %1065 = vperm.xlu0 %1064, %v384
      %v1066 = vpop.permute.xlu0 %1065
      %1069 = vset.pattern.permute.xlu0 0
      %1070 = vperm.xlu0 %1069, %v385
      %v1071 = vpop.permute.xlu0 %1070
      %v1074 = vsel %vm864, %v382, 0
      %v1077 = vsel %vm864, %v383, 0
      %1079 = vmatprep.subr.mxu0 %v1056
      %1080 = vmatpush1.msra.mxu0 %v1055
      %1081 = vmatprep.subr.mxu0 %v1058
      %1082 = vmatpush1.msra.mxu0 %v1057
      %1083 = vmatprep.subr.mxu0 %v1060
      %1084 = vmatpush1.msra.mxu0 %v1059
      %1085 = vmatprep.subr.mxu0 %v1062
      %1086 = vmatpush1.msra.mxu0 %v1061
      %1087 = vmatprep.subr.mxu0 0.0
      %1088 = vmatpush1.msra.mxu0 0.0
      %1089 = vmatprep.subr.mxu0 0.0
      %1090 = vmatpush1.msra.mxu0 0.0
      %1091 = vmatprep.subr.mxu0 0.0
      %1092 = vmatpush1.msra.mxu0 0.0
      %1093 = vmatprep.subr.mxu0 0.0
      %1094 = vmatpush1.msra.mxu0 0.0
      %1095 = vmatprep.subr.mxu0 0.0
      %1096 = vmatpush1.msra.mxu0 0.0
      %1097 = vmatprep.subr.mxu0 0.0
      %1098 = vmatpush1.msra.mxu0 0.0
      %1099 = vmatprep.subr.mxu0 0.0
      %1100 = vmatpush1.msra.mxu0 0.0
      %1101 = vmatprep.subr.mxu0 0.0
      %1102 = vmatpush1.msra.mxu0 0.0
      %1103 = vmatprep.subr.mxu0 0.0
      %1104 = vmatpush1.msra.mxu0 0.0
      %1105 = vmatprep.subr.mxu0 0.0
      %1106 = vmatpush1.msra.mxu0 0.0
      %1107 = vmatprep.subr.mxu0 0.0
      %1108 = vmatpush1.msra.mxu0 0.0
      %1109 = vmatprep.subr.mxu0 0.0
      %1110 = vmatpush1.msra.mxu0 0.0
      %1111 = vmatprep.subr.mxu0 0.0
      %1112 = vmatpush1.msra.mxu0 0.0
      %1113 = vmatprep.subr.mxu0 0.0
      %1114 = vmatpush1.msra.mxu0 0.0
      %1115 = vmatprep.subr.mxu0 0.0
      %1116 = vmatpush1.msra.mxu0 0.0
      %1117 = vmatprep.subr.mxu0 0.0
      %1118 = vmatpush1.msra.mxu0 0.0
      %1119 = vmatprep.subr.mxu0 0.0
      %1120 = vmatpush1.msra.mxu0 0.0
      %1121 = vmatprep.subr.mxu0 0.0
      %1122 = vmatpush1.msra.mxu0 0.0
      %1123 = vmatprep.subr.mxu0 0.0
      %1124 = vmatpush1.msra.mxu0 0.0
      %1125 = vmatprep.subr.mxu0 0.0
      %1126 = vmatpush1.msra.mxu0 0.0
      %1127 = vmatprep.subr.mxu0 0.0
      %1128 = vmatpush1.msra.mxu0 0.0
      %1129 = vmatprep.subr.mxu0 0.0
      %1130 = vmatpush1.msra.mxu0 0.0
      %1131 = vmatprep.subr.mxu0 0.0
      %1132 = vmatpush1.msra.mxu0 0.0
      %1133 = vmatprep.subr.mxu0 0.0
      %1134 = vmatpush1.msra.mxu0 0.0
      %1135 = vmatprep.subr.mxu0 0.0
      %1136 = vmatpush1.msra.mxu0 0.0
      %1137 = vmatprep.subr.mxu0 0.0
      %1138 = vmatpush1.msra.mxu0 0.0
      %1139 = vmatprep.subr.mxu0 0.0
      %1140 = vmatpush1.msra.mxu0 0.0
      %1141 = vmatprep.subr.mxu0 0.0
      %1142 = vmatpush1.msra.mxu0 0.0
      %1143 = vmatprep.mubr.f32.mxu0 0.0
      %1144 = vmatmul.mubr.f32.gmra.mrb[0].mxu0 %v1074
      %v1145 = vpop.f32.mrb[0].mxu0
      %v1146 = vadd.f32 %v1066, %v1145
      %v1147 = vpop.f32.mrb[0].mxu0
      %v1148 = vadd.f32 %v1066, %v1147
      %1149 = vmatprep.mubr.f32.mxu0 0.0
      %1150 = vmatmul.mubr.f32.gmra.mrb[0].mxu0 %v1077
      %v1151 = vpop.f32.mrb[0].mxu0
      %v1152 = vadd.f32 %v1071, %v1151
      %v1153 = vpop.f32.mrb[0].mxu0
      %v1154 = vadd.f32 %v1071, %v1153
      %1155 = vdwg.mxu0
      %1156 = vst [vmem:[%s313] sm:$0xff] %v1146
      %1157 = vst [vmem:[%s313 + $0x8] sm:$0xff] %v1148
      %1158 = vst [vmem:[%s313 + $0x10] sm:$0x3] %v1152
      %1159 = vst [vmem:[%s313 + $0x18] sm:$0x3] %v1154
      %v1160 = vxor.u32 %v1146, 2147483648
      %v1161 = vxor.u32 %v1148, 2147483648
      %v1162 = vmul.f32 %v1160, 1.442695
      %v1163 = vpow.pop %v1162
      %v1164 = vmul.f32 %v1161, 1.442695
      %v1165 = vpow.pop %v1164
      %v1166 = vadd.f32 %v1163, 1.0
      %v1167 = vadd.f32 %v1165, 1.0
      %v1168 = vrcp.pop %v1166
      %v1169 = vmul.f32 1.0, %v1168
      %v1170 = vrcp.pop %v1167
      %v1171 = vmul.f32 1.0, %v1170
      %1174 = vrot.lane.b32.xlu0 %v1169, 16
      %v1175 = vpop.permute.xlu0 %1174
      %1176 = vrot.lane.b32.xlu0 %v1171, 16
      %v1177 = vpop.permute.xlu0 %1176
      %v1178 = vsel %vm589, %v1175, %v1177
      %v1181 = vsel %vm589, 0.0, %v1175
      %v1182 = vmax.f32 %v1169, %v1181
      %v1183 = vmax.f32 %v1171, %v1178
      %1184 = vrot.lane.b32.xlu0 %v1169, 112
      %v1185 = vpop.permute.xlu0 %1184
      %1186 = vrot.lane.b32.xlu0 %v1171, 112
      %v1187 = vpop.permute.xlu0 %1186
      %v1188 = vsel %vm786, %v1185, %v1187
      %v1191 = vsel %vm786, %v1187, 0.0
      %v1192 = vmax.f32 %v1182, %v1188
      %v1193 = vmax.f32 %v1183, %v1191
      %1196 = vrot.lane.b32.xlu0 %v1192, 1
      %v1197 = vpop.permute.xlu0 %1196
      %1198 = vrot.lane.b32.xlu0 %v1193, 1
      %v1199 = vpop.permute.xlu0 %1198
      %v1200 = vsel %vm663, %v1197, %v1199
      %v1203 = vsel %vm663, 0.0, %v1197
      %v1204 = vmul.f32 %v1203, %v350
      %v1205 = vmul.f32 %v1200, %v351
      %v1206 = vmax.f32 %v1192, %v1204
      %v1207 = vmax.f32 %v1193, %v1205
      %1208 = vrot.lane.b32.xlu0 %v1192, 127
      %v1209 = vpop.permute.xlu0 %1208
      %1210 = vrot.lane.b32.xlu0 %v1193, 127
      %v1211 = vpop.permute.xlu0 %1210
      %v1212 = vsel %vm704, %v1209, %v1211
      %v1215 = vsel %vm704, %v1211, 0.0
      %v1216 = vmul.f32 %v1212, %v356
      %v1217 = vmul.f32 %v1215, %v357
      %v1218 = vmax.f32 %v1206, %v1216
      %v1219 = vmax.f32 %v1207, %v1217
      %vm1220 = vcmp.eq.f32.partialorder %v1218, %v1169
      %vm1221 = vcmp.eq.f32.partialorder %v1219, %v1171
      %v1222 = vsel %vm1220, 1, 0
      %v1223 = vsel %vm1221, 1, 0
      %v1224 = vcvt.s32.f32 %v1222
      %v1225 = vcvt.s32.f32 %v1223
      %v1226 = vmul.f32 %v1169, %v1224
      %v1227 = vmul.f32 %v1171, %v1225
      %v1230 = vcombine.low %v1226, %v1227
      %v1232 = vunpack.c.l.s4 1983009808
      %v1233 = vunpack.c.0.s8 %v1232
      %v1234 = vlaneseq
      %v1235 = vshrl.u32 %v1234, 7
      %v1236 = vsub.s32 %v1233, %v1235
      %v1237 = vrot.slane %v1230, %v1236
      %1239 = vst [vmem:[%s318] sm:$0xf] %v1237
      %p1240 = scmp.lt.s32.totalorder %s20, 1
      %s1241 = scalar_select %p1240, %s20, 1
      %s1242 = smul.addr %s1241, 4
      %s1243 = smul.addr %s1242, 8
      %s1244 = scalar_lea.vmem %s7, %s1243
      %p1245 = scmp.lt.s32.totalorder %s20, 1
      %s1246 = scalar_select %p1245, %s20, 1
      %s1247 = smul.addr %s1246, 2
      %s1248 = smul.addr %s1247, 2
      %s1249 = scalar_lea.vmem %s8, %s1248
      // Predicated region
      $region49: #{hg_net_edge_forward_test.1} parent=47 // pred_check
        %p1250 = pneg %p190
      $region50: #{hg_net_edge_forward_test.1} parent=47 // pred_check_branch
        %1252 = sbr.rel (%p1250) target = $region52
      $region51: #{hg_net_edge_forward_test.1} parent=47 // pred_region
        _
      $region52: #{hg_net_edge_forward_test.1} parent=47 // pred_fallthru
        _
      // Predicated region
      $region53: #{hg_net_edge_forward_test.1} parent=47 // pred_check
        %p1253 = pneg %p216
      $region54: #{hg_net_edge_forward_test.1} parent=47 // pred_check_branch
        %1255 = sbr.rel (%p1253) target = $region56
      $region55: #{hg_net_edge_forward_test.1} parent=47 // pred_region
        _
      $region56: #{hg_net_edge_forward_test.1} parent=47 // pred_fallthru
        _
    $region48: #{hg_net_edge_forward_test.1} parent=5 // pred_fallthru
      _
    %p1256 = scmp.le.s32.totalorder 2, %s15
    // Predicated region
    $region57: #{hg_net_edge_forward_test.1} parent=5 // pred_check
      %p1257 = pneg %p1256
    $region58: #{hg_net_edge_forward_test.1} parent=5 // pred_check_branch
      %1259 = sbr.rel (%p1257) target = $region60
    $region59: #{hg_net_edge_forward_test.1} parent=5 // pred_region
      %s1260 = ssub.s32 %s15, 2
      // Predicated region
      $region61: #{hg_net_edge_forward_test.1} parent=59 // pred_check
        %p1261 = pneg %p196
      $region62: #{hg_net_edge_forward_test.1} parent=59 // pred_check_branch
        %1263 = sbr.rel (%p1261) target = $region64
      $region63: #{hg_net_edge_forward_test.1} parent=59 // pred_region
        %p1264 = scmp.lt.s32.totalorder %s21, 1
        %s1265 = scalar_select %p1264, %s21, 1
        %s1266 = smul.addr %s1265, 4
        %s1267 = smul.addr %s1266, 8
        %s1268 = scalar_lea.vmem %s7, %s1267
      $region64: #{hg_net_edge_forward_test.1} parent=59 // pred_fallthru
        _
      // Predicated region
      $region65: #{hg_net_edge_forward_test.1} parent=59 // pred_check
        %p1269 = pneg %p222
      $region66: #{hg_net_edge_forward_test.1} parent=59 // pred_check_branch
        %1271 = sbr.rel (%p1269) target = $region68
      $region67: #{hg_net_edge_forward_test.1} parent=59 // pred_region
        %p1272 = scmp.lt.s32.totalorder %s21, 1
        %s1273 = scalar_select %p1272, %s21, 1
        %s1274 = smul.addr %s1273, 2
        %s1275 = smul.addr %s1274, 2
        %s1276 = scalar_lea.vmem %s8, %s1275
      $region68: #{hg_net_edge_forward_test.1} parent=59 // pred_fallthru
        _
    $region60: #{hg_net_edge_forward_test.1} parent=5 // pred_fallthru
      _
  $region6: #{hg_net_edge_forward_test.1} parent=0 // loop_footer
    %s19 = sadd.s32 1, %s15
  $region7: #{hg_net_edge_forward_test.1} parent=0 // loop_footer_branch
    %14 = sbr.rel target = $region3
  $region8: #{hg_net_edge_forward_test.1} parent=0 // loop_exit
    _

</llo_original>
